<compile_context>
chip_gen: v7x
topology: tpu7x:2x2x1
jax: 0.10.0
libtpu: 0.0.40
codegen_flags: <defaults>
</compile_context>

<pallas_src>
import functools
from typing import NamedTuple, Tuple

import jax
import jax.numpy as jnp
from jax.experimental import pallas as pl
from jax.experimental.pallas import tpu as pltpu


# ----------------------------------------------------------------------------- helpers
def _round_up(n, m):
    return ((n + m - 1) // m) * m


def _vmem_capacity_bytes():
    """Physical VMEM per TensorCore, with safe fallbacks."""
    try:
        info = pltpu.get_tpu_info()
        cap = int(getattr(info, "vmem_capacity_bytes", 0) or 0)
        if cap > 0:
            return cap
    except Exception:
        pass
    try:
        kind = jax.devices()[0].device_kind.lower()
    except Exception:
        kind = ""
    if "v7" in kind:
        return 64 * 1024 * 1024
    if any(tag in kind for tag in ("v4", "v5", "v6")):
        return 128 * 1024 * 1024
    return 64 * 1024 * 1024  # unknown chip -> conservative (v7x-sized) assumption


class _Plan(NamedTuple):
    batch_tile: int
    b_pad: int
    pdims: Tuple[int, ...]
    stream_w1: bool
    k_tile: int
    vmem_limit: int


def _make_plan(B, w_shapes, batch_tile=None, stream_w1=None, k_tile=None):
    """All static tiling / memory decisions (pure Python, hashable for jit)."""
    dims = (w_shapes[0][0],) + tuple(s[1] for s in w_shapes)
    pdims = tuple(_round_up(d, 128) for d in dims)

    cap = _vmem_capacity_bytes()
    ceiling = int(cap * 0.85)              # ~56 MiB on v7x, ~108 MiB on v5e/v6e
    tight_vmem = cap <= 96 * 1024 * 1024   # v7x-class: 64 MiB VMEM, 2 TensorCores

    if batch_tile is None:
        base = 256 if tight_vmem else 512  # 512-row tiles hit ~85% of HBM roofline on v5e/v6e
        b128 = _round_up(max(B, 1), 128)
        batch_tile = min(base, b128)
        # v7x has 2 TensorCores: make sure the "parallel" batch axis has >= 2 grid steps.
        if tight_vmem and batch_tile > 128 and b128 // batch_tile < 2:
            batch_tile //= 2
    b_pad = _round_up(max(B, 1), batch_tile)

    needs_pad = (B != b_pad) or (dims[0] % 128 != 0)
    x_item = 2 if needs_pad else 4         # pre-padded bf16 vs f32 passthrough (cast in-kernel)

    w5t_bytes = 16 * pdims[4] * 2
    w_resident = sum(pdims[i] * pdims[i + 1] * 2 for i in range(4)) + w5t_bytes
    out_tile = 2 * 16 * batch_tile * 4                       # double-buffered output slab
    slack = max(4 << 20, 2 * batch_tile * max(pdims) * 4)    # inter-layer f32 spills etc.

    resident_need = w_resident + 2 * batch_tile * pdims[0] * x_item + out_tile + slack

    if stream_w1 is None:
        stream_w1 = resident_need > ceiling

    if not stream_w1:
        vmem_limit = min(ceiling, max(32 << 20, resident_need))
        return _Plan(batch_tile, b_pad, pdims, False, 0, vmem_limit)

    if k_tile is None:
        k_tile = next(t for t in (512, 256, 128) if pdims[0] % t == 0)
    w_tail = sum(pdims[i] * pdims[i + 1] * 2 for i in range(1, 4)) + w5t_bytes
    streamed_need = (w_tail
                     + 2 * k_tile * pdims[1] * 2             # double-buffered w1 K-tiles
                     + batch_tile * pdims[1] * 4             # f32 layer-1 accumulator
                     + 2 * batch_tile * k_tile * x_item      # double-buffered x tiles
                     + out_tile + slack)
    # TODO(synk): if streamed_need still exceeds the ceiling (very large hidden_size),
    # also stream w2 and/or tile pdims[1]; not needed at WGAN discriminator sizes.
    vmem_limit = min(ceiling, max(32 << 20, streamed_need))
    return _Plan(batch_tile, b_pad, pdims, True, k_tile, vmem_limit)


# ----------------------------------------------------------------------------- kernels
def _leaky_relu_bf16(x):
    # LeakyReLU(0.2) == max(x, 0.2*x) for 0 < slope < 1: 2 VPU ops instead of cmp+mul+select.
    # Store the inter-layer activation as bf16 to halve spill/vreg traffic.
    return jnp.maximum(x, 0.2 * x).astype(jnp.bfloat16)


def _tail_layers(h1_f32, w2_ref, w3_ref, w4_ref, w5t_ref, o_ref):
    """Layers 2..5 + lane-dense output store, shared by both kernel variants."""
    h = _leaky_relu_bf16(h1_f32)
    h = _leaky_relu_bf16(jnp.dot(h, w2_ref[...], preferred_element_type=jnp.float32))
    h = _leaky_relu_bf16(jnp.dot(h, w3_ref[...], preferred_element_type=jnp.float32))
    h = _leaky_relu_bf16(jnp.dot(h, w4_ref[...], preferred_element_type=jnp.float32))
    # Final Linear(hidden, 1): w5 arrives transposed + padded to (16, hidden_p), so the
    # MXU emits the scores with the batch on the *lane* axis:
    #   scores[m, b] = sum_k w5t[m, k] * h[b, k]   (row 0 is the real output column).
    # The per-tile output is a tiny lane-dense (16, batch_tile) f32 slab instead of 128
    # padded f32 lanes per batch row.
    scores = jax.lax.dot_general(
        w5t_ref[...], h,
        dimension_numbers=(((1,), (1,)), ((), ())),     # (16,K) x (bt,K)^T -> (16, bt)
        preferred_element_type=jnp.float32)
    o_ref[...] = scores


def _mlp_kernel_resident(x_ref, w1_ref, w2_ref, w3_ref, w4_ref, w5t_ref, o_ref):
    """All weights whole-array VMEM resident; one batch tile per grid step."""
    # x may arrive f32 (aligned fast path) or bf16 (pre-padded path); cast in-kernel.
    h1 = jnp.dot(x_ref[...].astype(jnp.bfloat16), w1_ref[...],
                 preferred_element_type=jnp.float32)
    _tail_layers(h1, w2_ref, w3_ref, w4_ref, w5t_ref, o_ref)


def _mlp_kernel_streamed(x_ref, w1_ref, w2_ref, w3_ref, w4_ref, w5t_ref, o_ref, acc_ref):
    """Layer-1 K tiled over grid axis 1 ("arbitrary"); w1 streams double-buffered from
    HBM instead of being whole-array VMEM resident (required on v7x's 64 MiB VMEM)."""
    k = pl.program_id(1)

    @pl.when(k == 0)
    def _():
        acc_ref[...] = jnp.zeros_like(acc_ref)

    acc_ref[...] += jnp.dot(x_ref[...].astype(jnp.bfloat16), w1_ref[...],
                            preferred_element_type=jnp.float32)

    @pl.when(k == pl.num_programs(1) - 1)
    def _():
        _tail_layers(acc_ref[...], w2_ref, w3_ref, w4_ref, w5t_ref, o_ref)


# ----------------------------------------------------------------------------- wrapper
@functools.partial(jax.jit, static_argnames=("plan",))
def _forward_padded(x2d, weights, *, plan):
    w1, w2, w3, w4, w5 = weights
    p = plan.pdims
    B = x2d.shape[0]
    bt, b_pad = plan.batch_tile, plan.b_pad
    G = b_pad // bt

    def pad_w(w, din, dout):
        return jnp.pad(w, ((0, din - w.shape[0]), (0, dout - w.shape[1]))).astype(jnp.bfloat16)

    # NOTE: in a real training loop, pre-pad/cast the weights once outside the step.
    w1p = pad_w(w1, p[0], p[1])
    w2p = pad_w(w2, p[1], p[2])
    w3p = pad_w(w3, p[2], p[3])
    w4p = pad_w(w4, p[3], p[4])
    # Final layer stored transposed, out-dim padded to 16 sublanes (bf16 native tile).
    w5t = jnp.pad(w5.T, ((0, 16 - w5.shape[1]), (0, p[4] - w5.shape[0]))).astype(jnp.bfloat16)

    needs_pad = (B != b_pad) or (x2d.shape[1] != p[0])
    if needs_pad:
        # Fused pad+cast: one wrapper HBM pass at 2 B/elem (zeros are exact under the math).
        x_in = jnp.pad(x2d, ((0, b_pad - B), (0, p[0] - x2d.shape[1]))).astype(jnp.bfloat16)
    else:
        # Already aligned: no wrapper pass at all; the kernel casts the tile to bf16.
        x_in = x2d

    out_shape = jax.ShapeDtypeStruct((G * 16, bt), jnp.float32)
    wspec = pl.BlockSpec(memory_space=pltpu.MemorySpace.VMEM)   # whole-resident, single-buffered
    cparams = pltpu.CompilerParams(
        dimension_semantics=(("parallel",) if not plan.stream_w1
                             else ("parallel", "arbitrary")),
        vmem_limit_bytes=int(plan.vmem_limit),
    )

    if not plan.stream_w1:
        # If profiling ever shows exposed x-tile DMA at very large image_size, add
        # pipeline_mode=pl.Buffered(3) to the x BlockSpec (VMEM headroom permitting).
        out = pl.pallas_call(
            _mlp_kernel_resident,
            out_shape=out_shape,
            grid_spec=pltpu.PrefetchScalarGridSpec(
                num_scalar_prefetch=0,
                grid=(G,),
                in_specs=[pl.BlockSpec((bt, p[0]), lambda i: (i, 0)),
                          wspec, wspec, wspec, wspec, wspec],
                out_specs=pl.BlockSpec((16, bt), lambda i: (i, 0)),
            ),
            compiler_params=cparams,
        )(x_in, w1p, w2p, w3p, w4p, w5t)
    else:
        tk = plan.k_tile
        out = pl.pallas_call(
            _mlp_kernel_streamed,
            out_shape=out_shape,
            grid_spec=pltpu.PrefetchScalarGridSpec(
                num_scalar_prefetch=0,
                grid=(G, p[0] // tk),
                in_specs=[pl.BlockSpec((bt, tk), lambda i, k: (i, k)),
                          pl.BlockSpec((tk, p[1]), lambda i, k: (k, 0)),
                          wspec, wspec, wspec, wspec],
                out_specs=pl.BlockSpec((16, bt), lambda i, k: (i, 0)),
                scratch_shapes=[pltpu.VMEM((bt, p[1]), jnp.float32)],
            ),
            compiler_params=cparams,
        )(x_in, w1p, w2p, w3p, w4p, w5t)

    # Row 0 of each (16, bt) slab holds the real scores (batch on lanes).
    scores = out.reshape(G, 16, bt)[:, 0, :].reshape(-1)[:B]
    return scores[:, None]


def discriminator_forward(x, weights, batch_tile=None, stream_w1=None, k_tile=None):
    """x: any shape flattening to (-1, image_size). weights: 5 (in, out) matrices
    (transposed vs PyTorch's (out, in) Linear layout)."""
    weights = tuple(weights)
    image_size = weights[0].shape[0]
    x2d = x.reshape(-1, image_size)          # == input.view(-1, image_size)
    plan = _make_plan(x2d.shape[0], tuple(w.shape for w in weights),
                      batch_tile=batch_tile, stream_w1=stream_w1, k_tile=k_tile)
    return _forward_padded(x2d, weights, plan=plan)


# ----------------------------------------------------------------------------- testing
def init_weights(key, image_size, hidden_size):
    """Deterministic synthetic init; shapes mirror nn.Linear(in, out, bias=False),
    stored as (in, out) for the kernel."""
    dims = [
        (image_size, 16 * hidden_size),
        (16 * hidden_size, 4 * hidden_size),
        (4 * hidden_size, hidden_size),
        (hidden_size, hidden_size),
        (hidden_size, 1),
    ]
    keys = jax.random.split(key, len(dims))
    weights = []
    for k, (fan_in, fan_out) in zip(keys, dims):
        bound = float(fan_in) ** -0.5        # PyTorch default kaiming-uniform bound
        weights.append(jax.random.uniform(k, (fan_in, fan_out), jnp.float32, -bound, bound))
    return tuple(weights)


def reference_forward(x, weights):
    """Plain-JAX f32 reference of the PyTorch forward."""
    image_size = weights[0].shape[0]
    h = x.reshape(-1, image_size).astype(jnp.float32)
    for w in weights[:-1]:
        h = h @ w
        h = jnp.where(h > 0, h, 0.2 * h)
    return h @ weights[-1]


if __name__ == "__main__":
    root = jax.random.PRNGKey(0)

    def run_case(idx, image_size, hidden_size, batch, x_shape, **fwd_kw):
        kw, kx = jax.random.split(jax.random.fold_in(root, idx))
        weights = init_weights(kw, image_size, hidden_size)
        x = jax.random.normal(kx, x_shape, jnp.float32)
        out = jax.block_until_ready(discriminator_forward(x, weights, **fwd_kw))
        ref = reference_forward(x, weights)
        assert out.shape == (batch, 1), (idx, out.shape)
        # bf16 MXU inputs + bf16 inter-layer activations (f32 accumulation) vs f32 reference
        assert jnp.allclose(out, ref, atol=4e-2, rtol=4e-2), f"case {idx}: mismatch vs reference"

    # 1) small, unaligned batch -> padded bf16 input path, whole-resident weights.
    run_case(1, image_size=256, hidden_size=32, batch=16, x_shape=(16, 1, 16, 16))
    # 2) aligned batch -> f32 passthrough input (cast in-kernel), whole-resident weights.
    run_case(2, image_size=256, hidden_size=32, batch=128, x_shape=(128, 256))
    # 3) force the streamed-w1 (K-tiled) path: 2 batch tiles x 2 K tiles + batch padding.
    run_case(3, image_size=512, hidden_size=32, batch=200, x_shape=(200, 512),
             batch_tile=128, stream_w1=True, k_tile=256)

    print("KERNEL_OK")
</pallas_src>

<mosaic_0001>
module attributes {stable_mosaic.version = 11 : i64} {
  func.func @_mlp_kernel_resident(%arg0: i32, %arg1: memref<128x256xbf16, #tpu.memory_space<vmem>>, %arg2: memref<256x512xbf16, #tpu.memory_space<vmem>>, %arg3: memref<512x128xbf16, #tpu.memory_space<vmem>>, %arg4: memref<128x128xbf16, #tpu.memory_space<vmem>>, %arg5: memref<128x128xbf16, #tpu.memory_space<vmem>>, %arg6: memref<16x128xbf16, #tpu.memory_space<vmem>>, %arg7: memref<16x128xf32, #tpu.memory_space<vmem>>) attributes {dimension_semantics = [#tpu.dimension_semantics<parallel>], iteration_bounds = array<i64: 1>, scalar_prefetch = 0 : i64, scratch_operands = 0 : i64, tpu.core_type = #tpu.core_type<tc>, window_params = [{transform_indices = @transform_0, window_bounds = array<i64: 128, 256>}, {pipeline_mode = #tpu.pipeline_mode<synchronous>, transform_indices = @transform_1, window_bounds = array<i64: 256, 512>}, {pipeline_mode = #tpu.pipeline_mode<synchronous>, transform_indices = @transform_2, window_bounds = array<i64: 512, 128>}, {pipeline_mode = #tpu.pipeline_mode<synchronous>, transform_indices = @transform_3, window_bounds = array<i64: 128, 128>}, {pipeline_mode = #tpu.pipeline_mode<synchronous>, transform_indices = @transform_4, window_bounds = array<i64: 128, 128>}, {pipeline_mode = #tpu.pipeline_mode<synchronous>, transform_indices = @transform_5, window_bounds = array<i64: 16, 128>}, {transform_indices = @transform_6, window_bounds = array<i64: 16, 128>}]} {
    %c0 = arith.constant 0 : index
    %c0_0 = arith.constant 0 : index
    %0 = vector.load %arg1[%c0, %c0_0] : memref<128x256xbf16, #tpu.memory_space<vmem>>, vector<128x256xbf16>
    %c0_1 = arith.constant 0 : index
    %c0_2 = arith.constant 0 : index
    %1 = vector.load %arg2[%c0_1, %c0_2] : memref<256x512xbf16, #tpu.memory_space<vmem>>, vector<256x512xbf16>
    %cst = arith.constant dense<0.000000e+00> : vector<128x512xf32>
    %2 = tpu.matmul %0, %1, %cst {dimension_numbers = #tpu.dot_dimension_numbers<[1], [0], [0], [1], [0, 0, 1, 1], [], []>} : vector<128x256xbf16>, vector<256x512xbf16>, vector<128x512xf32> -> vector<128x512xf32>
    %cst_3 = arith.constant 2.000000e-01 : f32
    %3 = vector.broadcast %cst_3 : f32 to vector<128x512xf32>
    %4 = arith.mulf %3, %2 : vector<128x512xf32>
    %5 = arith.maximumf %2, %4 : vector<128x512xf32>
    %6 = arith.truncf %5 : vector<128x512xf32> to vector<128x512xbf16>
    %c0_4 = arith.constant 0 : index
    %c0_5 = arith.constant 0 : index
    %7 = vector.load %arg3[%c0_4, %c0_5] : memref<512x128xbf16, #tpu.memory_space<vmem>>, vector<512x128xbf16>
    %cst_6 = arith.constant dense<0.000000e+00> : vector<128x128xf32>
    %8 = tpu.matmul %6, %7, %cst_6 {dimension_numbers = #tpu.dot_dimension_numbers<[1], [0], [0], [1], [0, 0, 1, 1], [], []>} : vector<128x512xbf16>, vector<512x128xbf16>, vector<128x128xf32> -> vector<128x128xf32>
    %cst_7 = arith.constant 2.000000e-01 : f32
    %9 = vector.broadcast %cst_7 : f32 to vector<128x128xf32>
    %10 = arith.mulf %9, %8 : vector<128x128xf32>
    %11 = arith.maximumf %8, %10 : vector<128x128xf32>
    %12 = arith.truncf %11 : vector<128x128xf32> to vector<128x128xbf16>
    %c0_8 = arith.constant 0 : index
    %c0_9 = arith.constant 0 : index
    %13 = vector.load %arg4[%c0_8, %c0_9] : memref<128x128xbf16, #tpu.memory_space<vmem>>, vector<128x128xbf16>
    %cst_10 = arith.constant dense<0.000000e+00> : vector<128x128xf32>
    %14 = tpu.matmul %12, %13, %cst_10 {dimension_numbers = #tpu.dot_dimension_numbers<[1], [0], [0], [1], [0, 0, 1, 1], [], []>} : vector<128x128xbf16>, vector<128x128xbf16>, vector<128x128xf32> -> vector<128x128xf32>
    %cst_11 = arith.constant 2.000000e-01 : f32
    %15 = vector.broadcast %cst_11 : f32 to vector<128x128xf32>
    %16 = arith.mulf %15, %14 : vector<128x128xf32>
    %17 = arith.maximumf %14, %16 : vector<128x128xf32>
    %18 = arith.truncf %17 : vector<128x128xf32> to vector<128x128xbf16>
    %c0_12 = arith.constant 0 : index
    %c0_13 = arith.constant 0 : index
    %19 = vector.load %arg5[%c0_12, %c0_13] : memref<128x128xbf16, #tpu.memory_space<vmem>>, vector<128x128xbf16>
    %cst_14 = arith.constant dense<0.000000e+00> : vector<128x128xf32>
    %20 = tpu.matmul %18, %19, %cst_14 {dimension_numbers = #tpu.dot_dimension_numbers<[1], [0], [0], [1], [0, 0, 1, 1], [], []>} : vector<128x128xbf16>, vector<128x128xbf16>, vector<128x128xf32> -> vector<128x128xf32>
    %cst_15 = arith.constant 2.000000e-01 : f32
    %21 = vector.broadcast %cst_15 : f32 to vector<128x128xf32>
    %22 = arith.mulf %21, %20 : vector<128x128xf32>
    %23 = arith.maximumf %20, %22 : vector<128x128xf32>
    %24 = arith.truncf %23 : vector<128x128xf32> to vector<128x128xbf16>
    %c0_16 = arith.constant 0 : index
    %c0_17 = arith.constant 0 : index
    %25 = vector.load %arg6[%c0_16, %c0_17] : memref<16x128xbf16, #tpu.memory_space<vmem>>, vector<16x128xbf16>
    %cst_18 = arith.constant dense<0.000000e+00> : vector<16x128xf32>
    %26 = tpu.matmul %25, %24, %cst_18 {dimension_numbers = #tpu.dot_dimension_numbers<[1], [1], [0], [0], [0, 0, 1, 0], [], []>} : vector<16x128xbf16>, vector<128x128xbf16>, vector<16x128xf32> -> vector<16x128xf32>
    %c0_19 = arith.constant 0 : index
    %c0_20 = arith.constant 0 : index
    %27 = vector.load %arg7[%c0_19, %c0_20] : memref<16x128xf32, #tpu.memory_space<vmem>>, vector<16x128xf32>
    tpu.vector_store %arg7[%c0_19, %c0_20], %26 {strides = array<i32>} : memref<16x128xf32, #tpu.memory_space<vmem>>, vector<16x128xf32>,
    return
  }
  func.func @transform_0(%arg0: i32) -> (i32, i32) {
    %c0_i32 = arith.constant 0 : i32
    %c0_i32_0 = arith.constant 0 : i32
    return %arg0, %c0_i32 : i32, i32
  }
  func.func @transform_1(%arg0: i32) -> (i32, i32) {
    %c0_i32 = arith.constant 0 : i32
    %c0_i32_0 = arith.constant 0 : i32
    %c0_i32_1 = arith.constant 0 : i32
    return %c0_i32, %c0_i32_0 : i32, i32
  }
  func.func @transform_2(%arg0: i32) -> (i32, i32) {
    %c0_i32 = arith.constant 0 : i32
    %c0_i32_0 = arith.constant 0 : i32
    %c0_i32_1 = arith.constant 0 : i32
    return %c0_i32, %c0_i32_0 : i32, i32
  }
  func.func @transform_3(%arg0: i32) -> (i32, i32) {
    %c0_i32 = arith.constant 0 : i32
    %c0_i32_0 = arith.constant 0 : i32
    %c0_i32_1 = arith.constant 0 : i32
    return %c0_i32, %c0_i32_0 : i32, i32
  }
  func.func @transform_4(%arg0: i32) -> (i32, i32) {
    %c0_i32 = arith.constant 0 : i32
    %c0_i32_0 = arith.constant 0 : i32
    %c0_i32_1 = arith.constant 0 : i32
    return %c0_i32, %c0_i32_0 : i32, i32
  }
  func.func @transform_5(%arg0: i32) -> (i32, i32) {
    %c0_i32 = arith.constant 0 : i32
    %c0_i32_0 = arith.constant 0 : i32
    %c0_i32_1 = arith.constant 0 : i32
    return %c0_i32, %c0_i32_0 : i32, i32
  }
  func.func @transform_6(%arg0: i32) -> (i32, i32) {
    %c0_i32 = arith.constant 0 : i32
    %c0_i32_0 = arith.constant 0 : i32
    return %arg0, %c0_i32 : i32, i32
  }
}

</mosaic_0001>

<llo_original>
// kernel: _forward_padded.1
$region0: #{_forward_padded.1}
  #allocation0 [shape = 'u32[]', space=smem, size = 0x4, offset = 0x4, fixed_abs, tag = 'smem constant byte address 0x4 - core index']
  #allocation1 [shape = 'u32[144,128]{1,0:T(1,128)}', space=vmem, size = 0x12000, scoped, tag = 'internal scratch']
  %s0 = inlined_call_operand.vmem [shape: bf16[128,256], index: 0, kind: input, shape index: {}]
  %s1 = inlined_call_operand.vmem [shape: bf16[256,512], index: 1, kind: input, shape index: {}]
  %s2 = inlined_call_operand.vmem [shape: bf16[512,128], index: 2, kind: input, shape index: {}]
  %s3 = inlined_call_operand.vmem [shape: bf16[128,128], index: 3, kind: input, shape index: {}]
  %s4 = inlined_call_operand.vmem [shape: bf16[128,128], index: 4, kind: input, shape index: {}]
  %s5 = inlined_call_operand.vmem [shape: bf16[16,128], index: 5, kind: input, shape index: {}]
  %s6 = inlined_call_operand.vmem [shape: f32[16,128], index: 6, kind: output, shape index: {}]
  %s7 = sld [smem:[#allocation0]]
  $region34: #{_forward_padded.1} parent=0
    _
  %s9 = ssub.s32 1, %s7
  %s10 = scalar_select 0, %s9, %s7
  // Predicated region
  $region2: #{_forward_padded.1} parent=0 // pred_check
    _
  $region3: #{_forward_padded.1} parent=0 // pred_check_branch
    %12 = sbr.rel (0) target = $region5
  $region4: #{_forward_padded.1} parent=0 // pred_region
    _
  $region5: #{_forward_padded.1} parent=0 // pred_fallthru
    _
  // Predicated region
  $region6: #{_forward_padded.1} parent=0 // pred_check
    _
  $region7: #{_forward_padded.1} parent=0 // pred_check_branch
    %14 = sbr.rel (0) target = $region9
  $region8: #{_forward_padded.1} parent=0 // pred_region
    _
  $region9: #{_forward_padded.1} parent=0 // pred_fallthru
    _
  // Predicated region
  $region10: #{_forward_padded.1} parent=0 // pred_check
    _
  $region11: #{_forward_padded.1} parent=0 // pred_check_branch
    %16 = sbr.rel (0) target = $region13
  $region12: #{_forward_padded.1} parent=0 // pred_region
    _
  $region13: #{_forward_padded.1} parent=0 // pred_fallthru
    _
  // Predicated region
  $region14: #{_forward_padded.1} parent=0 // pred_check
    _
  $region15: #{_forward_padded.1} parent=0 // pred_check_branch
    %18 = sbr.rel (0) target = $region17
  $region16: #{_forward_padded.1} parent=0 // pred_region
    _
  $region17: #{_forward_padded.1} parent=0 // pred_fallthru
    _
  // Predicated region
  $region18: #{_forward_padded.1} parent=0 // pred_check
    _
  $region19: #{_forward_padded.1} parent=0 // pred_check_branch
    %20 = sbr.rel (0) target = $region21
  $region20: #{_forward_padded.1} parent=0 // pred_region
    _
  $region21: #{_forward_padded.1} parent=0 // pred_fallthru
    _
  // Predicated region
  $region22: #{_forward_padded.1} parent=0 // pred_check
    _
  $region23: #{_forward_padded.1} parent=0 // pred_check_branch
    %22 = sbr.rel (0) target = $region25
  $region24: #{_forward_padded.1} parent=0 // pred_region
    _
  $region25: #{_forward_padded.1} parent=0 // pred_fallthru
    _
  %v24 = vld [vmem:[%s0] sm:$0xff]
  %v25 = vld [vmem:[%s0 + $0x8] sm:$0xff]
  %v26 = vld [vmem:[%s0 + $0x10] sm:$0xff]
  %v27 = vld [vmem:[%s0 + $0x18] sm:$0xff]
  %v28 = vld [vmem:[%s0 + $0x20] sm:$0xff]
  %v29 = vld [vmem:[%s0 + $0x28] sm:$0xff]
  %v30 = vld [vmem:[%s0 + $0x30] sm:$0xff]
  %v31 = vld [vmem:[%s0 + $0x38] sm:$0xff]
  %v32 = vld [vmem:[%s0 + $0x40] sm:$0xff]
  %v33 = vld [vmem:[%s0 + $0x48] sm:$0xff]
  %v34 = vld [vmem:[%s0 + $0x50] sm:$0xff]
  %v35 = vld [vmem:[%s0 + $0x58] sm:$0xff]
  %v36 = vld [vmem:[%s0 + $0x60] sm:$0xff]
  %v37 = vld [vmem:[%s0 + $0x68] sm:$0xff]
  %v38 = vld [vmem:[%s0 + $0x70] sm:$0xff]
  %v39 = vld [vmem:[%s0 + $0x78] sm:$0xff]
  %v40 = vld [vmem:[%s1] sm:$0xff]
  %v41 = vld [vmem:[%s1 + $0x8] sm:$0xff]
  %v42 = vld [vmem:[%s1 + $0x10] sm:$0xff]
  %v43 = vld [vmem:[%s1 + $0x18] sm:$0xff]
  %v44 = vld [vmem:[%s1 + $0x20] sm:$0xff]
  %v45 = vld [vmem:[%s1 + $0x28] sm:$0xff]
  %v46 = vld [vmem:[%s1 + $0x30] sm:$0xff]
  %v47 = vld [vmem:[%s1 + $0x38] sm:$0xff]
  %v48 = vld [vmem:[%s1 + $0x40] sm:$0xff]
  %v49 = vld [vmem:[%s1 + $0x48] sm:$0xff]
  %v50 = vld [vmem:[%s1 + $0x50] sm:$0xff]
  %v51 = vld [vmem:[%s1 + $0x58] sm:$0xff]
  %v52 = vld [vmem:[%s1 + $0x60] sm:$0xff]
  %v53 = vld [vmem:[%s1 + $0x68] sm:$0xff]
  %v54 = vld [vmem:[%s1 + $0x70] sm:$0xff]
  %v55 = vld [vmem:[%s1 + $0x78] sm:$0xff]
  %v56 = vld [vmem:[%s1 + $0x80] sm:$0xff]
  %v57 = vld [vmem:[%s1 + $0x88] sm:$0xff]
  %v58 = vld [vmem:[%s1 + $0x90] sm:$0xff]
  %v59 = vld [vmem:[%s1 + $0x98] sm:$0xff]
  %v60 = vld [vmem:[%s1 + $0xa0] sm:$0xff]
  %v61 = vld [vmem:[%s1 + $0xa8] sm:$0xff]
  %v62 = vld [vmem:[%s1 + $0xb0] sm:$0xff]
  %v63 = vld [vmem:[%s1 + $0xb8] sm:$0xff]
  %v64 = vld [vmem:[%s1 + $0xc0] sm:$0xff]
  %v65 = vld [vmem:[%s1 + $0xc8] sm:$0xff]
  %v66 = vld [vmem:[%s1 + $0xd0] sm:$0xff]
  %v67 = vld [vmem:[%s1 + $0xd8] sm:$0xff]
  %v68 = vld [vmem:[%s1 + $0xe0] sm:$0xff]
  %v69 = vld [vmem:[%s1 + $0xe8] sm:$0xff]
  %v70 = vld [vmem:[%s1 + $0xf0] sm:$0xff]
  %v71 = vld [vmem:[%s1 + $0xf8] sm:$0xff]
  %v72 = vld [vmem:[%s1 + $0x100] sm:$0xff]
  %v73 = vld [vmem:[%s1 + $0x108] sm:$0xff]
  %v74 = vld [vmem:[%s1 + $0x110] sm:$0xff]
  %v75 = vld [vmem:[%s1 + $0x118] sm:$0xff]
  %v76 = vld [vmem:[%s1 + $0x120] sm:$0xff]
  %v77 = vld [vmem:[%s1 + $0x128] sm:$0xff]
  %v78 = vld [vmem:[%s1 + $0x130] sm:$0xff]
  %v79 = vld [vmem:[%s1 + $0x138] sm:$0xff]
  %v80 = vld [vmem:[%s1 + $0x140] sm:$0xff]
  %v81 = vld [vmem:[%s1 + $0x148] sm:$0xff]
  %v82 = vld [vmem:[%s1 + $0x150] sm:$0xff]
  %v83 = vld [vmem:[%s1 + $0x158] sm:$0xff]
  %v84 = vld [vmem:[%s1 + $0x160] sm:$0xff]
  %v85 = vld [vmem:[%s1 + $0x168] sm:$0xff]
  %v86 = vld [vmem:[%s1 + $0x170] sm:$0xff]
  %v87 = vld [vmem:[%s1 + $0x178] sm:$0xff]
  %v88 = vld [vmem:[%s1 + $0x180] sm:$0xff]
  %v89 = vld [vmem:[%s1 + $0x188] sm:$0xff]
  %v90 = vld [vmem:[%s1 + $0x190] sm:$0xff]
  %v91 = vld [vmem:[%s1 + $0x198] sm:$0xff]
  %v92 = vld [vmem:[%s1 + $0x1a0] sm:$0xff]
  %v93 = vld [vmem:[%s1 + $0x1a8] sm:$0xff]
  %v94 = vld [vmem:[%s1 + $0x1b0] sm:$0xff]
  %v95 = vld [vmem:[%s1 + $0x1b8] sm:$0xff]
  %v96 = vld [vmem:[%s1 + $0x1c0] sm:$0xff]
  %v97 = vld [vmem:[%s1 + $0x1c8] sm:$0xff]
  %v98 = vld [vmem:[%s1 + $0x1d0] sm:$0xff]
  %v99 = vld [vmem:[%s1 + $0x1d8] sm:$0xff]
  %v100 = vld [vmem:[%s1 + $0x1e0] sm:$0xff]
  %v101 = vld [vmem:[%s1 + $0x1e8] sm:$0xff]
  %v102 = vld [vmem:[%s1 + $0x1f0] sm:$0xff]
  %v103 = vld [vmem:[%s1 + $0x1f8] sm:$0xff]
  %v120 = vunpack.c.l.b16 %v24
  %v121 = vunpack.c.h.b16 %v24
  %v122 = vunpack.c.l.b16 %v25
  %v123 = vunpack.c.h.b16 %v25
  %v124 = vunpack.c.l.b16 %v26
  %v125 = vunpack.c.h.b16 %v26
  %v126 = vunpack.c.l.b16 %v27
  %v127 = vunpack.c.h.b16 %v27
  %v128 = vunpack.c.l.b16 %v28
  %v129 = vunpack.c.h.b16 %v28
  %v130 = vunpack.c.l.b16 %v29
  %v131 = vunpack.c.h.b16 %v29
  %v132 = vunpack.c.l.b16 %v30
  %v133 = vunpack.c.h.b16 %v30
  %v134 = vunpack.c.l.b16 %v31
  %v135 = vunpack.c.h.b16 %v31
  %v136 = vunpack.c.l.b16 %v32
  %v137 = vunpack.c.h.b16 %v32
  %v138 = vunpack.c.l.b16 %v33
  %v139 = vunpack.c.h.b16 %v33
  %v140 = vunpack.c.l.b16 %v34
  %v141 = vunpack.c.h.b16 %v34
  %v142 = vunpack.c.l.b16 %v35
  %v143 = vunpack.c.h.b16 %v35
  %v144 = vunpack.c.l.b16 %v36
  %v145 = vunpack.c.h.b16 %v36
  %v146 = vunpack.c.l.b16 %v37
  %v147 = vunpack.c.h.b16 %v37
  %v148 = vunpack.c.l.b16 %v38
  %v149 = vunpack.c.h.b16 %v38
  %v150 = vunpack.c.l.b16 %v39
  %v151 = vunpack.c.h.b16 %v39
  %v152 = vpack.c.b16 %v122, %v120
  %v153 = vpack.c.b16 %v123, %v121
  %v154 = vpack.c.b16 %v126, %v124
  %v155 = vpack.c.b16 %v127, %v125
  %v156 = vpack.c.b16 %v130, %v128
  %v157 = vpack.c.b16 %v131, %v129
  %v158 = vpack.c.b16 %v134, %v132
  %v159 = vpack.c.b16 %v135, %v133
  %v160 = vpack.c.b16 %v138, %v136
  %v161 = vpack.c.b16 %v139, %v137
  %v162 = vpack.c.b16 %v142, %v140
  %v163 = vpack.c.b16 %v143, %v141
  %v164 = vpack.c.b16 %v146, %v144
  %v165 = vpack.c.b16 %v147, %v145
  %v166 = vpack.c.b16 %v150, %v148
  %v167 = vpack.c.b16 %v151, %v149
  %v248 = vunpack.c.l.b16 %v40
  %v249 = vunpack.c.h.b16 %v40
  %v250 = vunpack.c.l.b16 %v41
  %v251 = vunpack.c.h.b16 %v41
  %v252 = vunpack.c.l.b16 %v42
  %v253 = vunpack.c.h.b16 %v42
  %v254 = vunpack.c.l.b16 %v43
  %v255 = vunpack.c.h.b16 %v43
  %v256 = vunpack.c.l.b16 %v44
  %v257 = vunpack.c.h.b16 %v44
  %v258 = vunpack.c.l.b16 %v45
  %v259 = vunpack.c.h.b16 %v45
  %v260 = vunpack.c.l.b16 %v46
  %v261 = vunpack.c.h.b16 %v46
  %v262 = vunpack.c.l.b16 %v47
  %v263 = vunpack.c.h.b16 %v47
  %v264 = vunpack.c.l.b16 %v48
  %v265 = vunpack.c.h.b16 %v48
  %v266 = vunpack.c.l.b16 %v49
  %v267 = vunpack.c.h.b16 %v49
  %v268 = vunpack.c.l.b16 %v50
  %v269 = vunpack.c.h.b16 %v50
  %v270 = vunpack.c.l.b16 %v51
  %v271 = vunpack.c.h.b16 %v51
  %v272 = vunpack.c.l.b16 %v52
  %v273 = vunpack.c.h.b16 %v52
  %v274 = vunpack.c.l.b16 %v53
  %v275 = vunpack.c.h.b16 %v53
  %v276 = vunpack.c.l.b16 %v54
  %v277 = vunpack.c.h.b16 %v54
  %v278 = vunpack.c.l.b16 %v55
  %v279 = vunpack.c.h.b16 %v55
  %v280 = vunpack.c.l.b16 %v56
  %v281 = vunpack.c.h.b16 %v56
  %v282 = vunpack.c.l.b16 %v57
  %v283 = vunpack.c.h.b16 %v57
  %v284 = vunpack.c.l.b16 %v58
  %v285 = vunpack.c.h.b16 %v58
  %v286 = vunpack.c.l.b16 %v59
  %v287 = vunpack.c.h.b16 %v59
  %v288 = vunpack.c.l.b16 %v60
  %v289 = vunpack.c.h.b16 %v60
  %v290 = vunpack.c.l.b16 %v61
  %v291 = vunpack.c.h.b16 %v61
  %v292 = vunpack.c.l.b16 %v62
  %v293 = vunpack.c.h.b16 %v62
  %v294 = vunpack.c.l.b16 %v63
  %v295 = vunpack.c.h.b16 %v63
  %v296 = vunpack.c.l.b16 %v64
  %v297 = vunpack.c.h.b16 %v64
  %v298 = vunpack.c.l.b16 %v65
  %v299 = vunpack.c.h.b16 %v65
  %v300 = vunpack.c.l.b16 %v66
  %v301 = vunpack.c.h.b16 %v66
  %v302 = vunpack.c.l.b16 %v67
  %v303 = vunpack.c.h.b16 %v67
  %v304 = vunpack.c.l.b16 %v68
  %v305 = vunpack.c.h.b16 %v68
  %v306 = vunpack.c.l.b16 %v69
  %v307 = vunpack.c.h.b16 %v69
  %v308 = vunpack.c.l.b16 %v70
  %v309 = vunpack.c.h.b16 %v70
  %v310 = vunpack.c.l.b16 %v71
  %v311 = vunpack.c.h.b16 %v71
  %v312 = vunpack.c.l.b16 %v72
  %v313 = vunpack.c.h.b16 %v72
  %v314 = vunpack.c.l.b16 %v73
  %v315 = vunpack.c.h.b16 %v73
  %v316 = vunpack.c.l.b16 %v74
  %v317 = vunpack.c.h.b16 %v74
  %v318 = vunpack.c.l.b16 %v75
  %v319 = vunpack.c.h.b16 %v75
  %v320 = vunpack.c.l.b16 %v76
  %v321 = vunpack.c.h.b16 %v76
  %v322 = vunpack.c.l.b16 %v77
  %v323 = vunpack.c.h.b16 %v77
  %v324 = vunpack.c.l.b16 %v78
  %v325 = vunpack.c.h.b16 %v78
  %v326 = vunpack.c.l.b16 %v79
  %v327 = vunpack.c.h.b16 %v79
  %v328 = vunpack.c.l.b16 %v80
  %v329 = vunpack.c.h.b16 %v80
  %v330 = vunpack.c.l.b16 %v81
  %v331 = vunpack.c.h.b16 %v81
  %v332 = vunpack.c.l.b16 %v82
  %v333 = vunpack.c.h.b16 %v82
  %v334 = vunpack.c.l.b16 %v83
  %v335 = vunpack.c.h.b16 %v83
  %v336 = vunpack.c.l.b16 %v84
  %v337 = vunpack.c.h.b16 %v84
  %v338 = vunpack.c.l.b16 %v85
  %v339 = vunpack.c.h.b16 %v85
  %v340 = vunpack.c.l.b16 %v86
  %v341 = vunpack.c.h.b16 %v86
  %v342 = vunpack.c.l.b16 %v87
  %v343 = vunpack.c.h.b16 %v87
  %v344 = vunpack.c.l.b16 %v88
  %v345 = vunpack.c.h.b16 %v88
  %v346 = vunpack.c.l.b16 %v89
  %v347 = vunpack.c.h.b16 %v89
  %v348 = vunpack.c.l.b16 %v90
  %v349 = vunpack.c.h.b16 %v90
  %v350 = vunpack.c.l.b16 %v91
  %v351 = vunpack.c.h.b16 %v91
  %v352 = vunpack.c.l.b16 %v92
  %v353 = vunpack.c.h.b16 %v92
  %v354 = vunpack.c.l.b16 %v93
  %v355 = vunpack.c.h.b16 %v93
  %v356 = vunpack.c.l.b16 %v94
  %v357 = vunpack.c.h.b16 %v94
  %v358 = vunpack.c.l.b16 %v95
  %v359 = vunpack.c.h.b16 %v95
  %v360 = vunpack.c.l.b16 %v96
  %v361 = vunpack.c.h.b16 %v96
  %v362 = vunpack.c.l.b16 %v97
  %v363 = vunpack.c.h.b16 %v97
  %v364 = vunpack.c.l.b16 %v98
  %v365 = vunpack.c.h.b16 %v98
  %v366 = vunpack.c.l.b16 %v99
  %v367 = vunpack.c.h.b16 %v99
  %v368 = vunpack.c.l.b16 %v100
  %v369 = vunpack.c.h.b16 %v100
  %v370 = vunpack.c.l.b16 %v101
  %v371 = vunpack.c.h.b16 %v101
  %v372 = vunpack.c.l.b16 %v102
  %v373 = vunpack.c.h.b16 %v102
  %v374 = vunpack.c.l.b16 %v103
  %v375 = vunpack.c.h.b16 %v103
  %v376 = vpack.c.b16 %v252, %v248
  %v377 = vpack.c.b16 %v253, %v249
  %v378 = vpack.c.b16 %v254, %v250
  %v379 = vpack.c.b16 %v255, %v251
  %v380 = vpack.c.b16 %v260, %v256
  %v381 = vpack.c.b16 %v261, %v257
  %v382 = vpack.c.b16 %v262, %v258
  %v383 = vpack.c.b16 %v263, %v259
  %v384 = vpack.c.b16 %v268, %v264
  %v385 = vpack.c.b16 %v269, %v265
  %v386 = vpack.c.b16 %v270, %v266
  %v387 = vpack.c.b16 %v271, %v267
  %v388 = vpack.c.b16 %v276, %v272
  %v389 = vpack.c.b16 %v277, %v273
  %v390 = vpack.c.b16 %v278, %v274
  %v391 = vpack.c.b16 %v279, %v275
  %v392 = vpack.c.b16 %v284, %v280
  %v393 = vpack.c.b16 %v285, %v281
  %v394 = vpack.c.b16 %v286, %v282
  %v395 = vpack.c.b16 %v287, %v283
  %v396 = vpack.c.b16 %v292, %v288
  %v397 = vpack.c.b16 %v293, %v289
  %v398 = vpack.c.b16 %v294, %v290
  %v399 = vpack.c.b16 %v295, %v291
  %v400 = vpack.c.b16 %v300, %v296
  %v401 = vpack.c.b16 %v301, %v297
  %v402 = vpack.c.b16 %v302, %v298
  %v403 = vpack.c.b16 %v303, %v299
  %v404 = vpack.c.b16 %v308, %v304
  %v405 = vpack.c.b16 %v309, %v305
  %v406 = vpack.c.b16 %v310, %v306
  %v407 = vpack.c.b16 %v311, %v307
  %v408 = vpack.c.b16 %v316, %v312
  %v409 = vpack.c.b16 %v317, %v313
  %v410 = vpack.c.b16 %v318, %v314
  %v411 = vpack.c.b16 %v319, %v315
  %v412 = vpack.c.b16 %v324, %v320
  %v413 = vpack.c.b16 %v325, %v321
  %v414 = vpack.c.b16 %v326, %v322
  %v415 = vpack.c.b16 %v327, %v323
  %v416 = vpack.c.b16 %v332, %v328
  %v417 = vpack.c.b16 %v333, %v329
  %v418 = vpack.c.b16 %v334, %v330
  %v419 = vpack.c.b16 %v335, %v331
  %v420 = vpack.c.b16 %v340, %v336
  %v421 = vpack.c.b16 %v341, %v337
  %v422 = vpack.c.b16 %v342, %v338
  %v423 = vpack.c.b16 %v343, %v339
  %v424 = vpack.c.b16 %v348, %v344
  %v425 = vpack.c.b16 %v349, %v345
  %v426 = vpack.c.b16 %v350, %v346
  %v427 = vpack.c.b16 %v351, %v347
  %v428 = vpack.c.b16 %v356, %v352
  %v429 = vpack.c.b16 %v357, %v353
  %v430 = vpack.c.b16 %v358, %v354
  %v431 = vpack.c.b16 %v359, %v355
  %v432 = vpack.c.b16 %v364, %v360
  %v433 = vpack.c.b16 %v365, %v361
  %v434 = vpack.c.b16 %v366, %v362
  %v435 = vpack.c.b16 %v367, %v363
  %v436 = vpack.c.b16 %v372, %v368
  %v437 = vpack.c.b16 %v373, %v369
  %v438 = vpack.c.b16 %v374, %v370
  %v439 = vpack.c.b16 %v375, %v371
  %504 = vmatprep.subr.bf16.mxu0 %v377
  %505 = vmatpush1.bf16.msra.mxu0 %v376
  %506 = vmatprep.subr.bf16.mxu0 %v381
  %507 = vmatpush1.bf16.msra.mxu0 %v380
  %508 = vmatprep.subr.bf16.mxu0 %v385
  %509 = vmatpush1.bf16.msra.mxu0 %v384
  %510 = vmatprep.subr.bf16.mxu0 %v389
  %511 = vmatpush1.bf16.msra.mxu0 %v388
  %512 = vmatprep.subr.bf16.mxu0 %v393
  %513 = vmatpush1.bf16.msra.mxu0 %v392
  %514 = vmatprep.subr.bf16.mxu0 %v397
  %515 = vmatpush1.bf16.msra.mxu0 %v396
  %516 = vmatprep.subr.bf16.mxu0 %v401
  %517 = vmatpush1.bf16.msra.mxu0 %v400
  %518 = vmatprep.subr.bf16.mxu0 %v405
  %519 = vmatpush1.bf16.msra.mxu0 %v404
  %520 = vmatprep.subr.bf16.mxu0 %v409
  %521 = vmatpush1.bf16.msra.mxu0 %v408
  %522 = vmatprep.subr.bf16.mxu0 %v413
  %523 = vmatpush1.bf16.msra.mxu0 %v412
  %524 = vmatprep.subr.bf16.mxu0 %v417
  %525 = vmatpush1.bf16.msra.mxu0 %v416
  %526 = vmatprep.subr.bf16.mxu0 %v421
  %527 = vmatpush1.bf16.msra.mxu0 %v420
  %528 = vmatprep.subr.bf16.mxu0 %v425
  %529 = vmatpush1.bf16.msra.mxu0 %v424
  %530 = vmatprep.subr.bf16.mxu0 %v429
  %531 = vmatpush1.bf16.msra.mxu0 %v428
  %532 = vmatprep.subr.bf16.mxu0 %v433
  %533 = vmatpush1.bf16.msra.mxu0 %v432
  %534 = vmatprep.subr.bf16.mxu0 %v437
  %535 = vmatpush1.bf16.msra.mxu0 %v436
  %536 = vmatprep.mubr.bf16.mxu0 %v153
  %537 = vmatmul.mubr.bf16.gmra.mrb[0].mxu0 %v152
  %v538 = vpop.f32.mrb[0].mxu0
  %v539 = vadd.f32 0.0, %v538
  %v540 = vpop.f32.mrb[0].mxu0
  %v541 = vadd.f32 0.0, %v540
  %v542 = vpop.f32.mrb[0].mxu0
  %v543 = vadd.f32 0.0, %v542
  %v544 = vpop.f32.mrb[0].mxu0
  %v545 = vadd.f32 0.0, %v544
  %546 = vmatprep.mubr.bf16.mxu0 %v155
  %547 = vmatmul.mubr.bf16.gmra.mrb[0].mxu0 %v154
  %v548 = vpop.f32.mrb[0].mxu0
  %v549 = vadd.f32 0.0, %v548
  %v550 = vpop.f32.mrb[0].mxu0
  %v551 = vadd.f32 0.0, %v550
  %v552 = vpop.f32.mrb[0].mxu0
  %v553 = vadd.f32 0.0, %v552
  %v554 = vpop.f32.mrb[0].mxu0
  %v555 = vadd.f32 0.0, %v554
  %556 = vmatprep.mubr.bf16.mxu0 %v157
  %557 = vmatmul.mubr.bf16.gmra.mrb[0].mxu0 %v156
  %v558 = vpop.f32.mrb[0].mxu0
  %v559 = vadd.f32 0.0, %v558
  %v560 = vpop.f32.mrb[0].mxu0
  %v561 = vadd.f32 0.0, %v560
  %v562 = vpop.f32.mrb[0].mxu0
  %v563 = vadd.f32 0.0, %v562
  %v564 = vpop.f32.mrb[0].mxu0
  %v565 = vadd.f32 0.0, %v564
  %566 = vmatprep.mubr.bf16.mxu0 %v159
  %567 = vmatmul.mubr.bf16.gmra.mrb[0].mxu0 %v158
  %v568 = vpop.f32.mrb[0].mxu0
  %v569 = vadd.f32 0.0, %v568
  %v570 = vpop.f32.mrb[0].mxu0
  %v571 = vadd.f32 0.0, %v570
  %v572 = vpop.f32.mrb[0].mxu0
  %v573 = vadd.f32 0.0, %v572
  %v574 = vpop.f32.mrb[0].mxu0
  %v575 = vadd.f32 0.0, %v574
  %576 = vmatprep.mubr.bf16.mxu0 %v161
  %577 = vmatmul.mubr.bf16.gmra.mrb[0].mxu0 %v160
  %v578 = vpop.f32.mrb[0].mxu0
  %v579 = vadd.f32 0.0, %v578
  %v580 = vpop.f32.mrb[0].mxu0
  %v581 = vadd.f32 0.0, %v580
  %v582 = vpop.f32.mrb[0].mxu0
  %v583 = vadd.f32 0.0, %v582
  %v584 = vpop.f32.mrb[0].mxu0
  %v585 = vadd.f32 0.0, %v584
  %586 = vmatprep.mubr.bf16.mxu0 %v163
  %587 = vmatmul.mubr.bf16.gmra.mrb[0].mxu0 %v162
  %v588 = vpop.f32.mrb[0].mxu0
  %v589 = vadd.f32 0.0, %v588
  %v590 = vpop.f32.mrb[0].mxu0
  %v591 = vadd.f32 0.0, %v590
  %v592 = vpop.f32.mrb[0].mxu0
  %v593 = vadd.f32 0.0, %v592
  %v594 = vpop.f32.mrb[0].mxu0
  %v595 = vadd.f32 0.0, %v594
  %596 = vmatprep.mubr.bf16.mxu0 %v165
  %597 = vmatmul.mubr.bf16.gmra.mrb[0].mxu0 %v164
  %v598 = vpop.f32.mrb[0].mxu0
  %v599 = vadd.f32 0.0, %v598
  %v600 = vpop.f32.mrb[0].mxu0
  %v601 = vadd.f32 0.0, %v600
  %v602 = vpop.f32.mrb[0].mxu0
  %v603 = vadd.f32 0.0, %v602
  %v604 = vpop.f32.mrb[0].mxu0
  %v605 = vadd.f32 0.0, %v604
  %606 = vmatprep.mubr.bf16.mxu0 %v167
  %607 = vmatmul.mubr.bf16.gmra.mrb[0].mxu0 %v166
  %v608 = vpop.f32.mrb[0].mxu0
  %v609 = vadd.f32 0.0, %v608
  %v610 = vpop.f32.mrb[0].mxu0
  %v611 = vadd.f32 0.0, %v610
  %v612 = vpop.f32.mrb[0].mxu0
  %v613 = vadd.f32 0.0, %v612
  %v614 = vpop.f32.mrb[0].mxu0
  %v615 = vadd.f32 0.0, %v614
  %616 = vdwg.mxu0
  %617 = vmatprep.subr.bf16.mxu0 %v379
  %618 = vmatpush1.bf16.msra.mxu0 %v378
  %619 = vmatprep.subr.bf16.mxu0 %v383
  %620 = vmatpush1.bf16.msra.mxu0 %v382
  %621 = vmatprep.subr.bf16.mxu0 %v387
  %622 = vmatpush1.bf16.msra.mxu0 %v386
  %623 = vmatprep.subr.bf16.mxu0 %v391
  %624 = vmatpush1.bf16.msra.mxu0 %v390
  %625 = vmatprep.subr.bf16.mxu0 %v395
  %626 = vmatpush1.bf16.msra.mxu0 %v394
  %627 = vmatprep.subr.bf16.mxu0 %v399
  %628 = vmatpush1.bf16.msra.mxu0 %v398
  %629 = vmatprep.subr.bf16.mxu0 %v403
  %630 = vmatpush1.bf16.msra.mxu0 %v402
  %631 = vmatprep.subr.bf16.mxu0 %v407
  %632 = vmatpush1.bf16.msra.mxu0 %v406
  %633 = vmatprep.subr.bf16.mxu0 %v411
  %634 = vmatpush1.bf16.msra.mxu0 %v410
  %635 = vmatprep.subr.bf16.mxu0 %v415
  %636 = vmatpush1.bf16.msra.mxu0 %v414
  %637 = vmatprep.subr.bf16.mxu0 %v419
  %638 = vmatpush1.bf16.msra.mxu0 %v418
  %639 = vmatprep.subr.bf16.mxu0 %v423
  %640 = vmatpush1.bf16.msra.mxu0 %v422
  %641 = vmatprep.subr.bf16.mxu0 %v427
  %642 = vmatpush1.bf16.msra.mxu0 %v426
  %643 = vmatprep.subr.bf16.mxu0 %v431
  %644 = vmatpush1.bf16.msra.mxu0 %v430
  %645 = vmatprep.subr.bf16.mxu0 %v435
  %646 = vmatpush1.bf16.msra.mxu0 %v434
  %647 = vmatprep.subr.bf16.mxu0 %v439
  %648 = vmatpush1.bf16.msra.mxu0 %v438
  %649 = vmatprep.mubr.bf16.mxu0 %v153
  %650 = vmatmul.mubr.bf16.gmra.mrb[0].mxu0 %v152
  %v651 = vpop.f32.mrb[0].mxu0
  %v652 = vadd.f32 0.0, %v651
  %v653 = vpop.f32.mrb[0].mxu0
  %v654 = vadd.f32 0.0, %v653
  %v655 = vpop.f32.mrb[0].mxu0
  %v656 = vadd.f32 0.0, %v655
  %v657 = vpop.f32.mrb[0].mxu0
  %v658 = vadd.f32 0.0, %v657
  %659 = vmatprep.mubr.bf16.mxu0 %v155
  %660 = vmatmul.mubr.bf16.gmra.mrb[0].mxu0 %v154
  %v661 = vpop.f32.mrb[0].mxu0
  %v662 = vadd.f32 0.0, %v661
  %v663 = vpop.f32.mrb[0].mxu0
  %v664 = vadd.f32 0.0, %v663
  %v665 = vpop.f32.mrb[0].mxu0
  %v666 = vadd.f32 0.0, %v665
  %v667 = vpop.f32.mrb[0].mxu0
  %v668 = vadd.f32 0.0, %v667
  %669 = vmatprep.mubr.bf16.mxu0 %v157
  %670 = vmatmul.mubr.bf16.gmra.mrb[0].mxu0 %v156
  %v671 = vpop.f32.mrb[0].mxu0
  %v672 = vadd.f32 0.0, %v671
  %v673 = vpop.f32.mrb[0].mxu0
  %v674 = vadd.f32 0.0, %v673
  %v675 = vpop.f32.mrb[0].mxu0
  %v676 = vadd.f32 0.0, %v675
  %v677 = vpop.f32.mrb[0].mxu0
  %v678 = vadd.f32 0.0, %v677
  %679 = vmatprep.mubr.bf16.mxu0 %v159
  %680 = vmatmul.mubr.bf16.gmra.mrb[0].mxu0 %v158
  %v681 = vpop.f32.mrb[0].mxu0
  %v682 = vadd.f32 0.0, %v681
  %v683 = vpop.f32.mrb[0].mxu0
  %v684 = vadd.f32 0.0, %v683
  %v685 = vpop.f32.mrb[0].mxu0
  %v686 = vadd.f32 0.0, %v685
  %v687 = vpop.f32.mrb[0].mxu0
  %v688 = vadd.f32 0.0, %v687
  %689 = vmatprep.mubr.bf16.mxu0 %v161
  %690 = vmatmul.mubr.bf16.gmra.mrb[0].mxu0 %v160
  %v691 = vpop.f32.mrb[0].mxu0
  %v692 = vadd.f32 0.0, %v691
  %v693 = vpop.f32.mrb[0].mxu0
  %v694 = vadd.f32 0.0, %v693
  %v695 = vpop.f32.mrb[0].mxu0
  %v696 = vadd.f32 0.0, %v695
  %v697 = vpop.f32.mrb[0].mxu0
  %v698 = vadd.f32 0.0, %v697
  %699 = vmatprep.mubr.bf16.mxu0 %v163
  %700 = vmatmul.mubr.bf16.gmra.mrb[0].mxu0 %v162
  %v701 = vpop.f32.mrb[0].mxu0
  %v702 = vadd.f32 0.0, %v701
  %v703 = vpop.f32.mrb[0].mxu0
  %v704 = vadd.f32 0.0, %v703
  %v705 = vpop.f32.mrb[0].mxu0
  %v706 = vadd.f32 0.0, %v705
  %v707 = vpop.f32.mrb[0].mxu0
  %v708 = vadd.f32 0.0, %v707
  %709 = vmatprep.mubr.bf16.mxu0 %v165
  %710 = vmatmul.mubr.bf16.gmra.mrb[0].mxu0 %v164
  %v711 = vpop.f32.mrb[0].mxu0
  %v712 = vadd.f32 0.0, %v711
  %v713 = vpop.f32.mrb[0].mxu0
  %v714 = vadd.f32 0.0, %v713
  %v715 = vpop.f32.mrb[0].mxu0
  %v716 = vadd.f32 0.0, %v715
  %v717 = vpop.f32.mrb[0].mxu0
  %v718 = vadd.f32 0.0, %v717
  %719 = vmatprep.mubr.bf16.mxu0 %v167
  %720 = vmatmul.mubr.bf16.gmra.mrb[0].mxu0 %v166
  %v721 = vpop.f32.mrb[0].mxu0
  %v722 = vadd.f32 0.0, %v721
  %v723 = vpop.f32.mrb[0].mxu0
  %v724 = vadd.f32 0.0, %v723
  %v725 = vpop.f32.mrb[0].mxu0
  %v726 = vadd.f32 0.0, %v725
  %v727 = vpop.f32.mrb[0].mxu0
  %v728 = vadd.f32 0.0, %v727
  %729 = vdwg.mxu0
  %v730 = vmul.f32 %v539, 0.2
  %v731 = vmul.f32 %v541, 0.2
  %v732 = vmul.f32 %v652, 0.2
  %v733 = vmul.f32 %v654, 0.2
  %v734 = vmul.f32 %v543, 0.2
  %v735 = vmul.f32 %v545, 0.2
  %v736 = vmul.f32 %v656, 0.2
  %v737 = vmul.f32 %v658, 0.2
  %v738 = vmul.f32 %v549, 0.2
  %v739 = vmul.f32 %v551, 0.2
  %v740 = vmul.f32 %v662, 0.2
  %v741 = vmul.f32 %v664, 0.2
  %v742 = vmul.f32 %v553, 0.2
  %v743 = vmul.f32 %v555, 0.2
  %v744 = vmul.f32 %v666, 0.2
  %v745 = vmul.f32 %v668, 0.2
  %v746 = vmul.f32 %v559, 0.2
  %v747 = vmul.f32 %v561, 0.2
  %v748 = vmul.f32 %v672, 0.2
  %v749 = vmul.f32 %v674, 0.2
  %v750 = vmul.f32 %v563, 0.2
  %v751 = vmul.f32 %v565, 0.2
  %v752 = vmul.f32 %v676, 0.2
  %v753 = vmul.f32 %v678, 0.2
  %v754 = vmul.f32 %v569, 0.2
  %v755 = vmul.f32 %v571, 0.2
  %v756 = vmul.f32 %v682, 0.2
  %v757 = vmul.f32 %v684, 0.2
  %v758 = vmul.f32 %v573, 0.2
  %v759 = vmul.f32 %v575, 0.2
  %v760 = vmul.f32 %v686, 0.2
  %v761 = vmul.f32 %v688, 0.2
  %v762 = vmul.f32 %v579, 0.2
  %v763 = vmul.f32 %v581, 0.2
  %v764 = vmul.f32 %v692, 0.2
  %v765 = vmul.f32 %v694, 0.2
  %v766 = vmul.f32 %v583, 0.2
  %v767 = vmul.f32 %v585, 0.2
  %v768 = vmul.f32 %v696, 0.2
  %v769 = vmul.f32 %v698, 0.2
  %v770 = vmul.f32 %v589, 0.2
  %v771 = vmul.f32 %v591, 0.2
  %v772 = vmul.f32 %v702, 0.2
  %v773 = vmul.f32 %v704, 0.2
  %v774 = vmul.f32 %v593, 0.2
  %v775 = vmul.f32 %v595, 0.2
  %v776 = vmul.f32 %v706, 0.2
  %v777 = vmul.f32 %v708, 0.2
  %v778 = vmul.f32 %v599, 0.2
  %v779 = vmul.f32 %v601, 0.2
  %v780 = vmul.f32 %v712, 0.2
  %v781 = vmul.f32 %v714, 0.2
  %v782 = vmul.f32 %v603, 0.2
  %v783 = vmul.f32 %v605, 0.2
  %v784 = vmul.f32 %v716, 0.2
  %v785 = vmul.f32 %v718, 0.2
  %v786 = vmul.f32 %v609, 0.2
  %v787 = vmul.f32 %v611, 0.2
  %v788 = vmul.f32 %v722, 0.2
  %v789 = vmul.f32 %v724, 0.2
  %v790 = vmul.f32 %v613, 0.2
  %v791 = vmul.f32 %v615, 0.2
  %v792 = vmul.f32 %v726, 0.2
  %v793 = vmul.f32 %v728, 0.2
  %v794 = vmax.f32 %v539, %v730
  %v795 = vmax.f32 %v541, %v731
  %v796 = vmax.f32 %v652, %v732
  %v797 = vmax.f32 %v654, %v733
  %v798 = vmax.f32 %v543, %v734
  %v799 = vmax.f32 %v545, %v735
  %v800 = vmax.f32 %v656, %v736
  %v801 = vmax.f32 %v658, %v737
  %v802 = vmax.f32 %v549, %v738
  %v803 = vmax.f32 %v551, %v739
  %v804 = vmax.f32 %v662, %v740
  %v805 = vmax.f32 %v664, %v741
  %v806 = vmax.f32 %v553, %v742
  %v807 = vmax.f32 %v555, %v743
  %v808 = vmax.f32 %v666, %v744
  %v809 = vmax.f32 %v668, %v745
  %v810 = vmax.f32 %v559, %v746
  %v811 = vmax.f32 %v561, %v747
  %v812 = vmax.f32 %v672, %v748
  %v813 = vmax.f32 %v674, %v749
  %v814 = vmax.f32 %v563, %v750
  %v815 = vmax.f32 %v565, %v751
  %v816 = vmax.f32 %v676, %v752
  %v817 = vmax.f32 %v678, %v753
  %v818 = vmax.f32 %v569, %v754
  %v819 = vmax.f32 %v571, %v755
  %v820 = vmax.f32 %v682, %v756
  %v821 = vmax.f32 %v684, %v757
  %v822 = vmax.f32 %v573, %v758
  %v823 = vmax.f32 %v575, %v759
  %v824 = vmax.f32 %v686, %v760
  %v825 = vmax.f32 %v688, %v761
  %v826 = vmax.f32 %v579, %v762
  %v827 = vmax.f32 %v581, %v763
  %v828 = vmax.f32 %v692, %v764
  %v829 = vmax.f32 %v694, %v765
  %v830 = vmax.f32 %v583, %v766
  %v831 = vmax.f32 %v585, %v767
  %v832 = vmax.f32 %v696, %v768
  %v833 = vmax.f32 %v698, %v769
  %v834 = vmax.f32 %v589, %v770
  %v835 = vmax.f32 %v591, %v771
  %v836 = vmax.f32 %v702, %v772
  %v837 = vmax.f32 %v704, %v773
  %v838 = vmax.f32 %v593, %v774
  %v839 = vmax.f32 %v595, %v775
  %v840 = vmax.f32 %v706, %v776
  %v841 = vmax.f32 %v708, %v777
  %v842 = vmax.f32 %v599, %v778
  %v843 = vmax.f32 %v601, %v779
  %v844 = vmax.f32 %v712, %v780
  %v845 = vmax.f32 %v714, %v781
  %v846 = vmax.f32 %v603, %v782
  %v847 = vmax.f32 %v605, %v783
  %v848 = vmax.f32 %v716, %v784
  %v849 = vmax.f32 %v718, %v785
  %v850 = vmax.f32 %v609, %v786
  %v851 = vmax.f32 %v611, %v787
  %v852 = vmax.f32 %v722, %v788
  %v853 = vmax.f32 %v724, %v789
  %v854 = vmax.f32 %v613, %v790
  %v855 = vmax.f32 %v615, %v791
  %v856 = vmax.f32 %v726, %v792
  %v857 = vmax.f32 %v728, %v793
  %v858 = vpack.c.bf16 %v798, %v794
  %v859 = vpack.c.bf16 %v799, %v795
  %v860 = vpack.c.bf16 %v800, %v796
  %v861 = vpack.c.bf16 %v801, %v797
  %v862 = vpack.c.bf16 %v806, %v802
  %v863 = vpack.c.bf16 %v807, %v803
  %v864 = vpack.c.bf16 %v808, %v804
  %v865 = vpack.c.bf16 %v809, %v805
  %v866 = vpack.c.bf16 %v814, %v810
  %v867 = vpack.c.bf16 %v815, %v811
  %v868 = vpack.c.bf16 %v816, %v812
  %v869 = vpack.c.bf16 %v817, %v813
  %v870 = vpack.c.bf16 %v822, %v818
  %v871 = vpack.c.bf16 %v823, %v819
  %v872 = vpack.c.bf16 %v824, %v820
  %v873 = vpack.c.bf16 %v825, %v821
  %v874 = vpack.c.bf16 %v830, %v826
  %v875 = vpack.c.bf16 %v831, %v827
  %v876 = vpack.c.bf16 %v832, %v828
  %v877 = vpack.c.bf16 %v833, %v829
  %v878 = vpack.c.bf16 %v838, %v834
  %v879 = vpack.c.bf16 %v839, %v835
  %v880 = vpack.c.bf16 %v840, %v836
  %v881 = vpack.c.bf16 %v841, %v837
  %v882 = vpack.c.bf16 %v846, %v842
  %v883 = vpack.c.bf16 %v847, %v843
  %v884 = vpack.c.bf16 %v848, %v844
  %v885 = vpack.c.bf16 %v849, %v845
  %v886 = vpack.c.bf16 %v854, %v850
  %v887 = vpack.c.bf16 %v855, %v851
  %v888 = vpack.c.bf16 %v856, %v852
  %v889 = vpack.c.bf16 %v857, %v853
  %v890 = vld [vmem:[%s2] sm:$0xf]
  %v891 = vld [vmem:[%s2 + $0x4] sm:$0xf]
  %v892 = vld [vmem:[%s2 + $0x8] sm:$0xf]
  %v893 = vld [vmem:[%s2 + $0xc] sm:$0xf]
  %v894 = vld [vmem:[%s2 + $0x10] sm:$0xf]
  %v895 = vld [vmem:[%s2 + $0x14] sm:$0xf]
  %v896 = vld [vmem:[%s2 + $0x18] sm:$0xf]
  %v897 = vld [vmem:[%s2 + $0x1c] sm:$0xf]
  %v898 = vld [vmem:[%s2 + $0x20] sm:$0xf]
  %v899 = vld [vmem:[%s2 + $0x24] sm:$0xf]
  %v900 = vld [vmem:[%s2 + $0x28] sm:$0xf]
  %v901 = vld [vmem:[%s2 + $0x2c] sm:$0xf]
  %v902 = vld [vmem:[%s2 + $0x30] sm:$0xf]
  %v903 = vld [vmem:[%s2 + $0x34] sm:$0xf]
  %v904 = vld [vmem:[%s2 + $0x38] sm:$0xf]
  %v905 = vld [vmem:[%s2 + $0x3c] sm:$0xf]
  %v906 = vld [vmem:[%s2 + $0x40] sm:$0xf]
  %v907 = vld [vmem:[%s2 + $0x44] sm:$0xf]
  %v908 = vld [vmem:[%s2 + $0x48] sm:$0xf]
  %v909 = vld [vmem:[%s2 + $0x4c] sm:$0xf]
  %v910 = vld [vmem:[%s2 + $0x50] sm:$0xf]
  %v911 = vld [vmem:[%s2 + $0x54] sm:$0xf]
  %v912 = vld [vmem:[%s2 + $0x58] sm:$0xf]
  %v913 = vld [vmem:[%s2 + $0x5c] sm:$0xf]
  %v914 = vld [vmem:[%s2 + $0x60] sm:$0xf]
  %v915 = vld [vmem:[%s2 + $0x64] sm:$0xf]
  %v916 = vld [vmem:[%s2 + $0x68] sm:$0xf]
  %v917 = vld [vmem:[%s2 + $0x6c] sm:$0xf]
  %v918 = vld [vmem:[%s2 + $0x70] sm:$0xf]
  %v919 = vld [vmem:[%s2 + $0x74] sm:$0xf]
  %v920 = vld [vmem:[%s2 + $0x78] sm:$0xf]
  %v921 = vld [vmem:[%s2 + $0x7c] sm:$0xf]
  %v922 = vld [vmem:[%s2 + $0x80] sm:$0xf]
  %v923 = vld [vmem:[%s2 + $0x84] sm:$0xf]
  %v924 = vld [vmem:[%s2 + $0x88] sm:$0xf]
  %v925 = vld [vmem:[%s2 + $0x8c] sm:$0xf]
  %v926 = vld [vmem:[%s2 + $0x90] sm:$0xf]
  %v927 = vld [vmem:[%s2 + $0x94] sm:$0xf]
  %v928 = vld [vmem:[%s2 + $0x98] sm:$0xf]
  %v929 = vld [vmem:[%s2 + $0x9c] sm:$0xf]
  %v930 = vld [vmem:[%s2 + $0xa0] sm:$0xf]
  %v931 = vld [vmem:[%s2 + $0xa4] sm:$0xf]
  %v932 = vld [vmem:[%s2 + $0xa8] sm:$0xf]
  %v933 = vld [vmem:[%s2 + $0xac] sm:$0xf]
  %v934 = vld [vmem:[%s2 + $0xb0] sm:$0xf]
  %v935 = vld [vmem:[%s2 + $0xb4] sm:$0xf]
  %v936 = vld [vmem:[%s2 + $0xb8] sm:$0xf]
  %v937 = vld [vmem:[%s2 + $0xbc] sm:$0xf]
  %v938 = vld [vmem:[%s2 + $0xc0] sm:$0xf]
  %v939 = vld [vmem:[%s2 + $0xc4] sm:$0xf]
  %v940 = vld [vmem:[%s2 + $0xc8] sm:$0xf]
  %v941 = vld [vmem:[%s2 + $0xcc] sm:$0xf]
  %v942 = vld [vmem:[%s2 + $0xd0] sm:$0xf]
  %v943 = vld [vmem:[%s2 + $0xd4] sm:$0xf]
  %v944 = vld [vmem:[%s2 + $0xd8] sm:$0xf]
  %v945 = vld [vmem:[%s2 + $0xdc] sm:$0xf]
  %v946 = vld [vmem:[%s2 + $0xe0] sm:$0xf]
  %v947 = vld [vmem:[%s2 + $0xe4] sm:$0xf]
  %v948 = vld [vmem:[%s2 + $0xe8] sm:$0xf]
  %v949 = vld [vmem:[%s2 + $0xec] sm:$0xf]
  %v950 = vld [vmem:[%s2 + $0xf0] sm:$0xf]
  %v951 = vld [vmem:[%s2 + $0xf4] sm:$0xf]
  %v952 = vld [vmem:[%s2 + $0xf8] sm:$0xf]
  %v953 = vld [vmem:[%s2 + $0xfc] sm:$0xf]
  %v1018 = vunpack.c.l.b16 %v890
  %v1019 = vunpack.c.l.b16 %v891
  %v1020 = vunpack.c.l.b16 %v892
  %v1021 = vunpack.c.l.b16 %v893
  %v1022 = vunpack.c.l.b16 %v894
  %v1023 = vunpack.c.l.b16 %v895
  %v1024 = vunpack.c.l.b16 %v896
  %v1025 = vunpack.c.l.b16 %v897
  %v1026 = vunpack.c.l.b16 %v898
  %v1027 = vunpack.c.l.b16 %v899
  %v1028 = vunpack.c.l.b16 %v900
  %v1029 = vunpack.c.l.b16 %v901
  %v1030 = vunpack.c.l.b16 %v902
  %v1031 = vunpack.c.l.b16 %v903
  %v1032 = vunpack.c.l.b16 %v904
  %v1033 = vunpack.c.l.b16 %v905
  %v1034 = vunpack.c.l.b16 %v906
  %v1035 = vunpack.c.l.b16 %v907
  %v1036 = vunpack.c.l.b16 %v908
  %v1037 = vunpack.c.l.b16 %v909
  %v1038 = vunpack.c.l.b16 %v910
  %v1039 = vunpack.c.l.b16 %v911
  %v1040 = vunpack.c.l.b16 %v912
  %v1041 = vunpack.c.l.b16 %v913
  %v1042 = vunpack.c.l.b16 %v914
  %v1043 = vunpack.c.l.b16 %v915
  %v1044 = vunpack.c.l.b16 %v916
  %v1045 = vunpack.c.l.b16 %v917
  %v1046 = vunpack.c.l.b16 %v918
  %v1047 = vunpack.c.l.b16 %v919
  %v1048 = vunpack.c.l.b16 %v920
  %v1049 = vunpack.c.l.b16 %v921
  %v1050 = vunpack.c.l.b16 %v922
  %v1051 = vunpack.c.l.b16 %v923
  %v1052 = vunpack.c.l.b16 %v924
  %v1053 = vunpack.c.l.b16 %v925
  %v1054 = vunpack.c.l.b16 %v926
  %v1055 = vunpack.c.l.b16 %v927
  %v1056 = vunpack.c.l.b16 %v928
  %v1057 = vunpack.c.l.b16 %v929
  %v1058 = vunpack.c.l.b16 %v930
  %v1059 = vunpack.c.l.b16 %v931
  %v1060 = vunpack.c.l.b16 %v932
  %v1061 = vunpack.c.l.b16 %v933
  %v1062 = vunpack.c.l.b16 %v934
  %v1063 = vunpack.c.l.b16 %v935
  %v1064 = vunpack.c.l.b16 %v936
  %v1065 = vunpack.c.l.b16 %v937
  %v1066 = vunpack.c.l.b16 %v938
  %v1067 = vunpack.c.l.b16 %v939
  %v1068 = vunpack.c.l.b16 %v940
  %v1069 = vunpack.c.l.b16 %v941
  %v1070 = vunpack.c.l.b16 %v942
  %v1071 = vunpack.c.l.b16 %v943
  %v1072 = vunpack.c.l.b16 %v944
  %v1073 = vunpack.c.l.b16 %v945
  %v1074 = vunpack.c.l.b16 %v946
  %v1075 = vunpack.c.l.b16 %v947
  %v1076 = vunpack.c.l.b16 %v948
  %v1077 = vunpack.c.l.b16 %v949
  %v1078 = vunpack.c.l.b16 %v950
  %v1079 = vunpack.c.l.b16 %v951
  %v1080 = vunpack.c.l.b16 %v952
  %v1081 = vunpack.c.l.b16 %v953
  %v1082 = vpack.c.b16 %v1019, %v1018
  %v1083 = vpack.c.b16 %v1021, %v1020
  %v1084 = vpack.c.b16 %v1023, %v1022
  %v1085 = vpack.c.b16 %v1025, %v1024
  %v1086 = vpack.c.b16 %v1027, %v1026
  %v1087 = vpack.c.b16 %v1029, %v1028
  %v1088 = vpack.c.b16 %v1031, %v1030
  %v1089 = vpack.c.b16 %v1033, %v1032
  %v1090 = vpack.c.b16 %v1035, %v1034
  %v1091 = vpack.c.b16 %v1037, %v1036
  %v1092 = vpack.c.b16 %v1039, %v1038
  %v1093 = vpack.c.b16 %v1041, %v1040
  %v1094 = vpack.c.b16 %v1043, %v1042
  %v1095 = vpack.c.b16 %v1045, %v1044
  %v1096 = vpack.c.b16 %v1047, %v1046
  %v1097 = vpack.c.b16 %v1049, %v1048
  %v1098 = vpack.c.b16 %v1051, %v1050
  %v1099 = vpack.c.b16 %v1053, %v1052
  %v1100 = vpack.c.b16 %v1055, %v1054
  %v1101 = vpack.c.b16 %v1057, %v1056
  %v1102 = vpack.c.b16 %v1059, %v1058
  %v1103 = vpack.c.b16 %v1061, %v1060
  %v1104 = vpack.c.b16 %v1063, %v1062
  %v1105 = vpack.c.b16 %v1065, %v1064
  %v1106 = vpack.c.b16 %v1067, %v1066
  %v1107 = vpack.c.b16 %v1069, %v1068
  %v1108 = vpack.c.b16 %v1071, %v1070
  %v1109 = vpack.c.b16 %v1073, %v1072
  %v1110 = vpack.c.b16 %v1075, %v1074
  %v1111 = vpack.c.b16 %v1077, %v1076
  %v1112 = vpack.c.b16 %v1079, %v1078
  %v1113 = vpack.c.b16 %v1081, %v1080
  %1146 = vmatprep.subr.bf16.mxu0 0
  %1147 = vmatpush1.bf16.msra.mxu0 %v1082
  %1148 = vmatprep.subr.bf16.mxu0 0
  %1149 = vmatpush1.bf16.msra.mxu0 %v1083
  %1150 = vmatprep.subr.bf16.mxu0 0
  %1151 = vmatpush1.bf16.msra.mxu0 %v1084
  %1152 = vmatprep.subr.bf16.mxu0 0
  %1153 = vmatpush1.bf16.msra.mxu0 %v1085
  %1154 = vmatprep.subr.bf16.mxu0 0
  %1155 = vmatpush1.bf16.msra.mxu0 %v1086
  %1156 = vmatprep.subr.bf16.mxu0 0
  %1157 = vmatpush1.bf16.msra.mxu0 %v1087
  %1158 = vmatprep.subr.bf16.mxu0 0
  %1159 = vmatpush1.bf16.msra.mxu0 %v1088
  %1160 = vmatprep.subr.bf16.mxu0 0
  %1161 = vmatpush1.bf16.msra.mxu0 %v1089
  %1162 = vmatprep.subr.bf16.mxu0 0
  %1163 = vmatpush1.bf16.msra.mxu0 %v1090
  %1164 = vmatprep.subr.bf16.mxu0 0
  %1165 = vmatpush1.bf16.msra.mxu0 %v1091
  %1166 = vmatprep.subr.bf16.mxu0 0
  %1167 = vmatpush1.bf16.msra.mxu0 %v1092
  %1168 = vmatprep.subr.bf16.mxu0 0
  %1169 = vmatpush1.bf16.msra.mxu0 %v1093
  %1170 = vmatprep.subr.bf16.mxu0 0
  %1171 = vmatpush1.bf16.msra.mxu0 %v1094
  %1172 = vmatprep.subr.bf16.mxu0 0
  %1173 = vmatpush1.bf16.msra.mxu0 %v1095
  %1174 = vmatprep.subr.bf16.mxu0 0
  %1175 = vmatpush1.bf16.msra.mxu0 %v1096
  %1176 = vmatprep.subr.bf16.mxu0 0
  %1177 = vmatpush1.bf16.msra.mxu0 %v1097
  %1178 = vmatprep.mubr.bf16.mxu0 %v859
  %1179 = vmatmul.mubr.bf16.gmra.mrb[0].mxu0 %v858
  %v1180 = vpop.f32.mrb[0].mxu0
  %v1181 = vadd.f32 0.0, %v1180
  %v1182 = vpop.f32.mrb[0].mxu0
  %v1183 = vpop.f32.mrb[0].mxu0
  %v1184 = vadd.f32 0.0, %v1183
  %v1185 = vpop.f32.mrb[0].mxu0
  %1186 = vmatprep.mubr.bf16.mxu0 %v863
  %1187 = vmatmul.mubr.bf16.gmra.mrb[0].mxu0 %v862
  %v1188 = vpop.f32.mrb[0].mxu0
  %v1189 = vadd.f32 0.0, %v1188
  %v1190 = vpop.f32.mrb[0].mxu0
  %v1191 = vpop.f32.mrb[0].mxu0
  %v1192 = vadd.f32 0.0, %v1191
  %v1193 = vpop.f32.mrb[0].mxu0
  %1194 = vmatprep.mubr.bf16.mxu0 %v867
  %1195 = vmatmul.mubr.bf16.gmra.mrb[0].mxu0 %v866
  %v1196 = vpop.f32.mrb[0].mxu0
  %v1197 = vadd.f32 0.0, %v1196
  %v1198 = vpop.f32.mrb[0].mxu0
  %v1199 = vpop.f32.mrb[0].mxu0
  %v1200 = vadd.f32 0.0, %v1199
  %v1201 = vpop.f32.mrb[0].mxu0
  %1202 = vmatprep.mubr.bf16.mxu0 %v871
  %1203 = vmatmul.mubr.bf16.gmra.mrb[0].mxu0 %v870
  %v1204 = vpop.f32.mrb[0].mxu0
  %v1205 = vadd.f32 0.0, %v1204
  %v1206 = vpop.f32.mrb[0].mxu0
  %v1207 = vpop.f32.mrb[0].mxu0
  %v1208 = vadd.f32 0.0, %v1207
  %v1209 = vpop.f32.mrb[0].mxu0
  %1210 = vmatprep.mubr.bf16.mxu0 %v875
  %1211 = vmatmul.mubr.bf16.gmra.mrb[0].mxu0 %v874
  %v1212 = vpop.f32.mrb[0].mxu0
  %v1213 = vadd.f32 0.0, %v1212
  %v1214 = vpop.f32.mrb[0].mxu0
  %v1215 = vpop.f32.mrb[0].mxu0
  %v1216 = vadd.f32 0.0, %v1215
  %v1217 = vpop.f32.mrb[0].mxu0
  %1218 = vmatprep.mubr.bf16.mxu0 %v879
  %1219 = vmatmul.mubr.bf16.gmra.mrb[0].mxu0 %v878
  %v1220 = vpop.f32.mrb[0].mxu0
  %v1221 = vadd.f32 0.0, %v1220
  %v1222 = vpop.f32.mrb[0].mxu0
  %v1223 = vpop.f32.mrb[0].mxu0
  %v1224 = vadd.f32 0.0, %v1223
  %v1225 = vpop.f32.mrb[0].mxu0
  %1226 = vmatprep.mubr.bf16.mxu0 %v883
  %1227 = vmatmul.mubr.bf16.gmra.mrb[0].mxu0 %v882
  %v1228 = vpop.f32.mrb[0].mxu0
  %v1229 = vadd.f32 0.0, %v1228
  %v1230 = vpop.f32.mrb[0].mxu0
  %v1231 = vpop.f32.mrb[0].mxu0
  %v1232 = vadd.f32 0.0, %v1231
  %v1233 = vpop.f32.mrb[0].mxu0
  %1234 = vmatprep.mubr.bf16.mxu0 %v887
  %1235 = vmatmul.mubr.bf16.gmra.mrb[0].mxu0 %v886
  %v1236 = vpop.f32.mrb[0].mxu0
  %v1237 = vadd.f32 0.0, %v1236
  %v1238 = vpop.f32.mrb[0].mxu0
  %v1239 = vpop.f32.mrb[0].mxu0
  %v1240 = vadd.f32 0.0, %v1239
  %v1241 = vpop.f32.mrb[0].mxu0
  %1242 = vdwg.mxu0
  %1243 = vmatprep.subr.bf16.mxu0 0
  %1244 = vmatpush1.bf16.msra.mxu0 %v1098
  %1245 = vmatprep.subr.bf16.mxu0 0
  %1246 = vmatpush1.bf16.msra.mxu0 %v1099
  %1247 = vmatprep.subr.bf16.mxu0 0
  %1248 = vmatpush1.bf16.msra.mxu0 %v1100
  %1249 = vmatprep.subr.bf16.mxu0 0
  %1250 = vmatpush1.bf16.msra.mxu0 %v1101
  %1251 = vmatprep.subr.bf16.mxu0 0
  %1252 = vmatpush1.bf16.msra.mxu0 %v1102
  %1253 = vmatprep.subr.bf16.mxu0 0
  %1254 = vmatpush1.bf16.msra.mxu0 %v1103
  %1255 = vmatprep.subr.bf16.mxu0 0
  %1256 = vmatpush1.bf16.msra.mxu0 %v1104
  %1257 = vmatprep.subr.bf16.mxu0 0
  %1258 = vmatpush1.bf16.msra.mxu0 %v1105
  %1259 = vmatprep.subr.bf16.mxu0 0
  %1260 = vmatpush1.bf16.msra.mxu0 %v1106
  %1261 = vmatprep.subr.bf16.mxu0 0
  %1262 = vmatpush1.bf16.msra.mxu0 %v1107
  %1263 = vmatprep.subr.bf16.mxu0 0
  %1264 = vmatpush1.bf16.msra.mxu0 %v1108
  %1265 = vmatprep.subr.bf16.mxu0 0
  %1266 = vmatpush1.bf16.msra.mxu0 %v1109
  %1267 = vmatprep.subr.bf16.mxu0 0
  %1268 = vmatpush1.bf16.msra.mxu0 %v1110
  %1269 = vmatprep.subr.bf16.mxu0 0
  %1270 = vmatpush1.bf16.msra.mxu0 %v1111
  %1271 = vmatprep.subr.bf16.mxu0 0
  %1272 = vmatpush1.bf16.msra.mxu0 %v1112
  %1273 = vmatprep.subr.bf16.mxu0 0
  %1274 = vmatpush1.bf16.msra.mxu0 %v1113
  %1275 = vmatprep.mubr.bf16.mxu0 %v861
  %1276 = vmatmul.mubr.bf16.gmra.mrb[0].mxu0 %v860
  %v1277 = vpop.f32.mrb[0].mxu0
  %v1278 = vadd.f32 %v1181, %v1277
  %v1279 = vpop.f32.mrb[0].mxu0
  %v1280 = vpop.f32.mrb[0].mxu0
  %v1281 = vadd.f32 %v1184, %v1280
  %v1282 = vpop.f32.mrb[0].mxu0
  %1283 = vmatprep.mubr.bf16.mxu0 %v865
  %1284 = vmatmul.mubr.bf16.gmra.mrb[0].mxu0 %v864
  %v1285 = vpop.f32.mrb[0].mxu0
  %v1286 = vadd.f32 %v1189, %v1285
  %v1287 = vpop.f32.mrb[0].mxu0
  %v1288 = vpop.f32.mrb[0].mxu0
  %v1289 = vadd.f32 %v1192, %v1288
  %v1290 = vpop.f32.mrb[0].mxu0
  %1291 = vmatprep.mubr.bf16.mxu0 %v869
  %1292 = vmatmul.mubr.bf16.gmra.mrb[0].mxu0 %v868
  %v1293 = vpop.f32.mrb[0].mxu0
  %v1294 = vadd.f32 %v1197, %v1293
  %v1295 = vpop.f32.mrb[0].mxu0
  %v1296 = vpop.f32.mrb[0].mxu0
  %v1297 = vadd.f32 %v1200, %v1296
  %v1298 = vpop.f32.mrb[0].mxu0
  %1299 = vmatprep.mubr.bf16.mxu0 %v873
  %1300 = vmatmul.mubr.bf16.gmra.mrb[0].mxu0 %v872
  %v1301 = vpop.f32.mrb[0].mxu0
  %v1302 = vadd.f32 %v1205, %v1301
  %v1303 = vpop.f32.mrb[0].mxu0
  %v1304 = vpop.f32.mrb[0].mxu0
  %v1305 = vadd.f32 %v1208, %v1304
  %v1306 = vpop.f32.mrb[0].mxu0
  %1307 = vmatprep.mubr.bf16.mxu0 %v877
  %1308 = vmatmul.mubr.bf16.gmra.mrb[0].mxu0 %v876
  %v1309 = vpop.f32.mrb[0].mxu0
  %v1310 = vadd.f32 %v1213, %v1309
  %v1311 = vpop.f32.mrb[0].mxu0
  %v1312 = vpop.f32.mrb[0].mxu0
  %v1313 = vadd.f32 %v1216, %v1312
  %v1314 = vpop.f32.mrb[0].mxu0
  %1315 = vmatprep.mubr.bf16.mxu0 %v881
  %1316 = vmatmul.mubr.bf16.gmra.mrb[0].mxu0 %v880
  %v1317 = vpop.f32.mrb[0].mxu0
  %v1318 = vadd.f32 %v1221, %v1317
  %v1319 = vpop.f32.mrb[0].mxu0
  %v1320 = vpop.f32.mrb[0].mxu0
  %v1321 = vadd.f32 %v1224, %v1320
  %v1322 = vpop.f32.mrb[0].mxu0
  %1323 = vmatprep.mubr.bf16.mxu0 %v885
  %1324 = vmatmul.mubr.bf16.gmra.mrb[0].mxu0 %v884
  %v1325 = vpop.f32.mrb[0].mxu0
  %v1326 = vadd.f32 %v1229, %v1325
  %v1327 = vpop.f32.mrb[0].mxu0
  %v1328 = vpop.f32.mrb[0].mxu0
  %v1329 = vadd.f32 %v1232, %v1328
  %v1330 = vpop.f32.mrb[0].mxu0
  %1331 = vmatprep.mubr.bf16.mxu0 %v889
  %1332 = vmatmul.mubr.bf16.gmra.mrb[0].mxu0 %v888
  %v1333 = vpop.f32.mrb[0].mxu0
  %v1334 = vadd.f32 %v1237, %v1333
  %v1335 = vpop.f32.mrb[0].mxu0
  %v1336 = vpop.f32.mrb[0].mxu0
  %v1337 = vadd.f32 %v1240, %v1336
  %v1338 = vpop.f32.mrb[0].mxu0
  %1339 = vdwg.mxu0
  %v1340 = vmul.f32 %v1278, 0.2
  %v1341 = vmul.f32 %v1281, 0.2
  %v1342 = vmul.f32 %v1286, 0.2
  %v1343 = vmul.f32 %v1289, 0.2
  %v1344 = vmul.f32 %v1294, 0.2
  %v1345 = vmul.f32 %v1297, 0.2
  %v1346 = vmul.f32 %v1302, 0.2
  %v1347 = vmul.f32 %v1305, 0.2
  %v1348 = vmul.f32 %v1310, 0.2
  %v1349 = vmul.f32 %v1313, 0.2
  %v1350 = vmul.f32 %v1318, 0.2
  %v1351 = vmul.f32 %v1321, 0.2
  %v1352 = vmul.f32 %v1326, 0.2
  %v1353 = vmul.f32 %v1329, 0.2
  %v1354 = vmul.f32 %v1334, 0.2
  %v1355 = vmul.f32 %v1337, 0.2
  %v1356 = vmax.f32 %v1278, %v1340
  %v1357 = vmax.f32 %v1281, %v1341
  %v1358 = vmax.f32 %v1286, %v1342
  %v1359 = vmax.f32 %v1289, %v1343
  %v1360 = vmax.f32 %v1294, %v1344
  %v1361 = vmax.f32 %v1297, %v1345
  %v1362 = vmax.f32 %v1302, %v1346
  %v1363 = vmax.f32 %v1305, %v1347
  %v1364 = vmax.f32 %v1310, %v1348
  %v1365 = vmax.f32 %v1313, %v1349
  %v1366 = vmax.f32 %v1318, %v1350
  %v1367 = vmax.f32 %v1321, %v1351
  %v1368 = vmax.f32 %v1326, %v1352
  %v1369 = vmax.f32 %v1329, %v1353
  %v1370 = vmax.f32 %v1334, %v1354
  %v1371 = vmax.f32 %v1337, %v1355
  %v1372 = vpack.c.bf16 %v1357, %v1356
  %v1373 = vpack.c.bf16 %v1359, %v1358
  %v1374 = vpack.c.bf16 %v1361, %v1360
  %v1375 = vpack.c.bf16 %v1363, %v1362
  %v1376 = vpack.c.bf16 %v1365, %v1364
  %v1377 = vpack.c.bf16 %v1367, %v1366
  %v1378 = vpack.c.bf16 %v1369, %v1368
  %v1379 = vpack.c.bf16 %v1371, %v1370
  %v1380 = vld [vmem:[%s3] sm:$0xf]
  %v1381 = vld [vmem:[%s3 + $0x4] sm:$0xf]
  %v1382 = vld [vmem:[%s3 + $0x8] sm:$0xf]
  %v1383 = vld [vmem:[%s3 + $0xc] sm:$0xf]
  %v1384 = vld [vmem:[%s3 + $0x10] sm:$0xf]
  %v1385 = vld [vmem:[%s3 + $0x14] sm:$0xf]
  %v1386 = vld [vmem:[%s3 + $0x18] sm:$0xf]
  %v1387 = vld [vmem:[%s3 + $0x1c] sm:$0xf]
  %v1388 = vld [vmem:[%s3 + $0x20] sm:$0xf]
  %v1389 = vld [vmem:[%s3 + $0x24] sm:$0xf]
  %v1390 = vld [vmem:[%s3 + $0x28] sm:$0xf]
  %v1391 = vld [vmem:[%s3 + $0x2c] sm:$0xf]
  %v1392 = vld [vmem:[%s3 + $0x30] sm:$0xf]
  %v1393 = vld [vmem:[%s3 + $0x34] sm:$0xf]
  %v1394 = vld [vmem:[%s3 + $0x38] sm:$0xf]
  %v1395 = vld [vmem:[%s3 + $0x3c] sm:$0xf]
  %v1412 = vunpack.c.l.b16 %v1380
  %v1413 = vunpack.c.l.b16 %v1381
  %v1414 = vunpack.c.l.b16 %v1382
  %v1415 = vunpack.c.l.b16 %v1383
  %v1416 = vunpack.c.l.b16 %v1384
  %v1417 = vunpack.c.l.b16 %v1385
  %v1418 = vunpack.c.l.b16 %v1386
  %v1419 = vunpack.c.l.b16 %v1387
  %v1420 = vunpack.c.l.b16 %v1388
  %v1421 = vunpack.c.l.b16 %v1389
  %v1422 = vunpack.c.l.b16 %v1390
  %v1423 = vunpack.c.l.b16 %v1391
  %v1424 = vunpack.c.l.b16 %v1392
  %v1425 = vunpack.c.l.b16 %v1393
  %v1426 = vunpack.c.l.b16 %v1394
  %v1427 = vunpack.c.l.b16 %v1395
  %v1428 = vpack.c.b16 %v1413, %v1412
  %v1429 = vpack.c.b16 %v1415, %v1414
  %v1430 = vpack.c.b16 %v1417, %v1416
  %v1431 = vpack.c.b16 %v1419, %v1418
  %v1432 = vpack.c.b16 %v1421, %v1420
  %v1433 = vpack.c.b16 %v1423, %v1422
  %v1434 = vpack.c.b16 %v1425, %v1424
  %v1435 = vpack.c.b16 %v1427, %v1426
  %1444 = vmatprep.subr.bf16.mxu0 0
  %1445 = vmatpush1.bf16.msra.mxu0 %v1428
  %1446 = vmatprep.subr.bf16.mxu0 0
  %1447 = vmatpush1.bf16.msra.mxu0 %v1429
  %1448 = vmatprep.subr.bf16.mxu0 0
  %1449 = vmatpush1.bf16.msra.mxu0 %v1430
  %1450 = vmatprep.subr.bf16.mxu0 0
  %1451 = vmatpush1.bf16.msra.mxu0 %v1431
  %1452 = vmatprep.subr.bf16.mxu0 0
  %1453 = vmatpush1.bf16.msra.mxu0 %v1432
  %1454 = vmatprep.subr.bf16.mxu0 0
  %1455 = vmatpush1.bf16.msra.mxu0 %v1433
  %1456 = vmatprep.subr.bf16.mxu0 0
  %1457 = vmatpush1.bf16.msra.mxu0 %v1434
  %1458 = vmatprep.subr.bf16.mxu0 0
  %1459 = vmatpush1.bf16.msra.mxu0 %v1435
  %1460 = vmatprep.subr.bf16.mxu0 0
  %1461 = vmatpush1.bf16.msra.mxu0 0
  %1462 = vmatprep.subr.bf16.mxu0 0
  %1463 = vmatpush1.bf16.msra.mxu0 0
  %1464 = vmatprep.subr.bf16.mxu0 0
  %1465 = vmatpush1.bf16.msra.mxu0 0
  %1466 = vmatprep.subr.bf16.mxu0 0
  %1467 = vmatpush1.bf16.msra.mxu0 0
  %1468 = vmatprep.subr.bf16.mxu0 0
  %1469 = vmatpush1.bf16.msra.mxu0 0
  %1470 = vmatprep.subr.bf16.mxu0 0
  %1471 = vmatpush1.bf16.msra.mxu0 0
  %1472 = vmatprep.subr.bf16.mxu0 0
  %1473 = vmatpush1.bf16.msra.mxu0 0
  %1474 = vmatprep.subr.bf16.mxu0 0
  %1475 = vmatpush1.bf16.msra.mxu0 0
  %1476 = vmatprep.mubr.bf16.mxu0 0
  %1477 = vmatmul.mubr.bf16.gmra.mrb[0].mxu0 %v1372
  %v1478 = vpop.f32.mrb[0].mxu0
  %v1479 = vadd.f32 0.0, %v1478
  %v1480 = vpop.f32.mrb[0].mxu0
  %v1481 = vpop.f32.mrb[0].mxu0
  %v1482 = vadd.f32 0.0, %v1481
  %v1483 = vpop.f32.mrb[0].mxu0
  %1484 = vmatprep.mubr.bf16.mxu0 0
  %1485 = vmatmul.mubr.bf16.gmra.mrb[0].mxu0 %v1373
  %v1486 = vpop.f32.mrb[0].mxu0
  %v1487 = vadd.f32 0.0, %v1486
  %v1488 = vpop.f32.mrb[0].mxu0
  %v1489 = vpop.f32.mrb[0].mxu0
  %v1490 = vadd.f32 0.0, %v1489
  %v1491 = vpop.f32.mrb[0].mxu0
  %1492 = vmatprep.mubr.bf16.mxu0 0
  %1493 = vmatmul.mubr.bf16.gmra.mrb[0].mxu0 %v1374
  %v1494 = vpop.f32.mrb[0].mxu0
  %v1495 = vadd.f32 0.0, %v1494
  %v1496 = vpop.f32.mrb[0].mxu0
  %v1497 = vpop.f32.mrb[0].mxu0
  %v1498 = vadd.f32 0.0, %v1497
  %v1499 = vpop.f32.mrb[0].mxu0
  %1500 = vmatprep.mubr.bf16.mxu0 0
  %1501 = vmatmul.mubr.bf16.gmra.mrb[0].mxu0 %v1375
  %v1502 = vpop.f32.mrb[0].mxu0
  %v1503 = vadd.f32 0.0, %v1502
  %v1504 = vpop.f32.mrb[0].mxu0
  %v1505 = vpop.f32.mrb[0].mxu0
  %v1506 = vadd.f32 0.0, %v1505
  %v1507 = vpop.f32.mrb[0].mxu0
  %1508 = vmatprep.mubr.bf16.mxu0 0
  %1509 = vmatmul.mubr.bf16.gmra.mrb[0].mxu0 %v1376
  %v1510 = vpop.f32.mrb[0].mxu0
  %v1511 = vadd.f32 0.0, %v1510
  %v1512 = vpop.f32.mrb[0].mxu0
  %v1513 = vpop.f32.mrb[0].mxu0
  %v1514 = vadd.f32 0.0, %v1513
  %v1515 = vpop.f32.mrb[0].mxu0
  %1516 = vmatprep.mubr.bf16.mxu0 0
  %1517 = vmatmul.mubr.bf16.gmra.mrb[0].mxu0 %v1377
  %v1518 = vpop.f32.mrb[0].mxu0
  %v1519 = vadd.f32 0.0, %v1518
  %v1520 = vpop.f32.mrb[0].mxu0
  %v1521 = vpop.f32.mrb[0].mxu0
  %v1522 = vadd.f32 0.0, %v1521
  %v1523 = vpop.f32.mrb[0].mxu0
  %1524 = vmatprep.mubr.bf16.mxu0 0
  %1525 = vmatmul.mubr.bf16.gmra.mrb[0].mxu0 %v1378
  %v1526 = vpop.f32.mrb[0].mxu0
  %v1527 = vadd.f32 0.0, %v1526
  %v1528 = vpop.f32.mrb[0].mxu0
  %v1529 = vpop.f32.mrb[0].mxu0
  %v1530 = vadd.f32 0.0, %v1529
  %v1531 = vpop.f32.mrb[0].mxu0
  %1532 = vmatprep.mubr.bf16.mxu0 0
  %1533 = vmatmul.mubr.bf16.gmra.mrb[0].mxu0 %v1379
  %v1534 = vpop.f32.mrb[0].mxu0
  %v1535 = vadd.f32 0.0, %v1534
  %v1536 = vpop.f32.mrb[0].mxu0
  %v1537 = vpop.f32.mrb[0].mxu0
  %v1538 = vadd.f32 0.0, %v1537
  %v1539 = vpop.f32.mrb[0].mxu0
  %1540 = vdwg.mxu0
  %v1541 = vmul.f32 %v1479, 0.2
  %v1542 = vmul.f32 %v1482, 0.2
  %v1543 = vmul.f32 %v1487, 0.2
  %v1544 = vmul.f32 %v1490, 0.2
  %v1545 = vmul.f32 %v1495, 0.2
  %v1546 = vmul.f32 %v1498, 0.2
  %v1547 = vmul.f32 %v1503, 0.2
  %v1548 = vmul.f32 %v1506, 0.2
  %v1549 = vmul.f32 %v1511, 0.2
  %v1550 = vmul.f32 %v1514, 0.2
  %v1551 = vmul.f32 %v1519, 0.2
  %v1552 = vmul.f32 %v1522, 0.2
  %v1553 = vmul.f32 %v1527, 0.2
  %v1554 = vmul.f32 %v1530, 0.2
  %v1555 = vmul.f32 %v1535, 0.2
  %v1556 = vmul.f32 %v1538, 0.2
  %v1557 = vmax.f32 %v1479, %v1541
  %v1558 = vmax.f32 %v1482, %v1542
  %v1559 = vmax.f32 %v1487, %v1543
  %v1560 = vmax.f32 %v1490, %v1544
  %v1561 = vmax.f32 %v1495, %v1545
  %v1562 = vmax.f32 %v1498, %v1546
  %v1563 = vmax.f32 %v1503, %v1547
  %v1564 = vmax.f32 %v1506, %v1548
  %v1565 = vmax.f32 %v1511, %v1549
  %v1566 = vmax.f32 %v1514, %v1550
  %v1567 = vmax.f32 %v1519, %v1551
  %v1568 = vmax.f32 %v1522, %v1552
  %v1569 = vmax.f32 %v1527, %v1553
  %v1570 = vmax.f32 %v1530, %v1554
  %v1571 = vmax.f32 %v1535, %v1555
  %v1572 = vmax.f32 %v1538, %v1556
  %v1573 = vpack.c.bf16 %v1558, %v1557
  %v1574 = vpack.c.bf16 %v1560, %v1559
  %v1575 = vpack.c.bf16 %v1562, %v1561
  %v1576 = vpack.c.bf16 %v1564, %v1563
  %v1577 = vpack.c.bf16 %v1566, %v1565
  %v1578 = vpack.c.bf16 %v1568, %v1567
  %v1579 = vpack.c.bf16 %v1570, %v1569
  %v1580 = vpack.c.bf16 %v1572, %v1571
  %v1581 = vld [vmem:[%s4] sm:$0xf]
  %v1582 = vld [vmem:[%s4 + $0x4] sm:$0xf]
  %v1583 = vld [vmem:[%s4 + $0x8] sm:$0xf]
  %v1584 = vld [vmem:[%s4 + $0xc] sm:$0xf]
  %v1585 = vld [vmem:[%s4 + $0x10] sm:$0xf]
  %v1586 = vld [vmem:[%s4 + $0x14] sm:$0xf]
  %v1587 = vld [vmem:[%s4 + $0x18] sm:$0xf]
  %v1588 = vld [vmem:[%s4 + $0x1c] sm:$0xf]
  %v1589 = vld [vmem:[%s4 + $0x20] sm:$0xf]
  %v1590 = vld [vmem:[%s4 + $0x24] sm:$0xf]
  %v1591 = vld [vmem:[%s4 + $0x28] sm:$0xf]
  %v1592 = vld [vmem:[%s4 + $0x2c] sm:$0xf]
  %v1593 = vld [vmem:[%s4 + $0x30] sm:$0xf]
  %v1594 = vld [vmem:[%s4 + $0x34] sm:$0xf]
  %v1595 = vld [vmem:[%s4 + $0x38] sm:$0xf]
  %v1596 = vld [vmem:[%s4 + $0x3c] sm:$0xf]
  %v1613 = vunpack.c.l.b16 %v1581
  %v1614 = vunpack.c.l.b16 %v1582
  %v1615 = vunpack.c.l.b16 %v1583
  %v1616 = vunpack.c.l.b16 %v1584
  %v1617 = vunpack.c.l.b16 %v1585
  %v1618 = vunpack.c.l.b16 %v1586
  %v1619 = vunpack.c.l.b16 %v1587
  %v1620 = vunpack.c.l.b16 %v1588
  %v1621 = vunpack.c.l.b16 %v1589
  %v1622 = vunpack.c.l.b16 %v1590
  %v1623 = vunpack.c.l.b16 %v1591
  %v1624 = vunpack.c.l.b16 %v1592
  %v1625 = vunpack.c.l.b16 %v1593
  %v1626 = vunpack.c.l.b16 %v1594
  %v1627 = vunpack.c.l.b16 %v1595
  %v1628 = vunpack.c.l.b16 %v1596
  %v1629 = vpack.c.b16 %v1614, %v1613
  %v1630 = vpack.c.b16 %v1616, %v1615
  %v1631 = vpack.c.b16 %v1618, %v1617
  %v1632 = vpack.c.b16 %v1620, %v1619
  %v1633 = vpack.c.b16 %v1622, %v1621
  %v1634 = vpack.c.b16 %v1624, %v1623
  %v1635 = vpack.c.b16 %v1626, %v1625
  %v1636 = vpack.c.b16 %v1628, %v1627
  %1645 = vmatprep.subr.bf16.mxu0 0
  %1646 = vmatpush1.bf16.msra.mxu0 %v1629
  %1647 = vmatprep.subr.bf16.mxu0 0
  %1648 = vmatpush1.bf16.msra.mxu0 %v1630
  %1649 = vmatprep.subr.bf16.mxu0 0
  %1650 = vmatpush1.bf16.msra.mxu0 %v1631
  %1651 = vmatprep.subr.bf16.mxu0 0
  %1652 = vmatpush1.bf16.msra.mxu0 %v1632
  %1653 = vmatprep.subr.bf16.mxu0 0
  %1654 = vmatpush1.bf16.msra.mxu0 %v1633
  %1655 = vmatprep.subr.bf16.mxu0 0
  %1656 = vmatpush1.bf16.msra.mxu0 %v1634
  %1657 = vmatprep.subr.bf16.mxu0 0
  %1658 = vmatpush1.bf16.msra.mxu0 %v1635
  %1659 = vmatprep.subr.bf16.mxu0 0
  %1660 = vmatpush1.bf16.msra.mxu0 %v1636
  %1661 = vmatprep.subr.bf16.mxu0 0
  %1662 = vmatpush1.bf16.msra.mxu0 0
  %1663 = vmatprep.subr.bf16.mxu0 0
  %1664 = vmatpush1.bf16.msra.mxu0 0
  %1665 = vmatprep.subr.bf16.mxu0 0
  %1666 = vmatpush1.bf16.msra.mxu0 0
  %1667 = vmatprep.subr.bf16.mxu0 0
  %1668 = vmatpush1.bf16.msra.mxu0 0
  %1669 = vmatprep.subr.bf16.mxu0 0
  %1670 = vmatpush1.bf16.msra.mxu0 0
  %1671 = vmatprep.subr.bf16.mxu0 0
  %1672 = vmatpush1.bf16.msra.mxu0 0
  %1673 = vmatprep.subr.bf16.mxu0 0
  %1674 = vmatpush1.bf16.msra.mxu0 0
  %1675 = vmatprep.subr.bf16.mxu0 0
  %1676 = vmatpush1.bf16.msra.mxu0 0
  %1677 = vmatprep.mubr.bf16.mxu0 0
  %1678 = vmatmul.mubr.bf16.gmra.mrb[0].mxu0 %v1573
  %v1679 = vpop.f32.mrb[0].mxu0
  %v1680 = vadd.f32 0.0, %v1679
  %v1681 = vpop.f32.mrb[0].mxu0
  %v1682 = vpop.f32.mrb[0].mxu0
  %v1683 = vadd.f32 0.0, %v1682
  %v1684 = vpop.f32.mrb[0].mxu0
  %1685 = vmatprep.mubr.bf16.mxu0 0
  %1686 = vmatmul.mubr.bf16.gmra.mrb[0].mxu0 %v1574
  %v1687 = vpop.f32.mrb[0].mxu0
  %v1688 = vadd.f32 0.0, %v1687
  %v1689 = vpop.f32.mrb[0].mxu0
  %v1690 = vpop.f32.mrb[0].mxu0
  %v1691 = vadd.f32 0.0, %v1690
  %v1692 = vpop.f32.mrb[0].mxu0
  %1693 = vmatprep.mubr.bf16.mxu0 0
  %1694 = vmatmul.mubr.bf16.gmra.mrb[0].mxu0 %v1575
  %v1695 = vpop.f32.mrb[0].mxu0
  %v1696 = vadd.f32 0.0, %v1695
  %v1697 = vpop.f32.mrb[0].mxu0
  %v1698 = vpop.f32.mrb[0].mxu0
  %v1699 = vadd.f32 0.0, %v1698
  %v1700 = vpop.f32.mrb[0].mxu0
  %1701 = vmatprep.mubr.bf16.mxu0 0
  %1702 = vmatmul.mubr.bf16.gmra.mrb[0].mxu0 %v1576
  %v1703 = vpop.f32.mrb[0].mxu0
  %v1704 = vadd.f32 0.0, %v1703
  %v1705 = vpop.f32.mrb[0].mxu0
  %v1706 = vpop.f32.mrb[0].mxu0
  %v1707 = vadd.f32 0.0, %v1706
  %v1708 = vpop.f32.mrb[0].mxu0
  %1709 = vmatprep.mubr.bf16.mxu0 0
  %1710 = vmatmul.mubr.bf16.gmra.mrb[0].mxu0 %v1577
  %v1711 = vpop.f32.mrb[0].mxu0
  %v1712 = vadd.f32 0.0, %v1711
  %v1713 = vpop.f32.mrb[0].mxu0
  %v1714 = vpop.f32.mrb[0].mxu0
  %v1715 = vadd.f32 0.0, %v1714
  %v1716 = vpop.f32.mrb[0].mxu0
  %1717 = vmatprep.mubr.bf16.mxu0 0
  %1718 = vmatmul.mubr.bf16.gmra.mrb[0].mxu0 %v1578
  %v1719 = vpop.f32.mrb[0].mxu0
  %v1720 = vadd.f32 0.0, %v1719
  %v1721 = vpop.f32.mrb[0].mxu0
  %v1722 = vpop.f32.mrb[0].mxu0
  %v1723 = vadd.f32 0.0, %v1722
  %v1724 = vpop.f32.mrb[0].mxu0
  %1725 = vmatprep.mubr.bf16.mxu0 0
  %1726 = vmatmul.mubr.bf16.gmra.mrb[0].mxu0 %v1579
  %v1727 = vpop.f32.mrb[0].mxu0
  %v1728 = vadd.f32 0.0, %v1727
  %v1729 = vpop.f32.mrb[0].mxu0
  %v1730 = vpop.f32.mrb[0].mxu0
  %v1731 = vadd.f32 0.0, %v1730
  %v1732 = vpop.f32.mrb[0].mxu0
  %1733 = vmatprep.mubr.bf16.mxu0 0
  %1734 = vmatmul.mubr.bf16.gmra.mrb[0].mxu0 %v1580
  %v1735 = vpop.f32.mrb[0].mxu0
  %v1736 = vadd.f32 0.0, %v1735
  %v1737 = vpop.f32.mrb[0].mxu0
  %v1738 = vpop.f32.mrb[0].mxu0
  %v1739 = vadd.f32 0.0, %v1738
  %v1740 = vpop.f32.mrb[0].mxu0
  %1741 = vdwg.mxu0
  %v1742 = vmul.f32 %v1680, 0.2
  %v1743 = vmul.f32 %v1683, 0.2
  %v1744 = vmul.f32 %v1688, 0.2
  %v1745 = vmul.f32 %v1691, 0.2
  %v1746 = vmul.f32 %v1696, 0.2
  %v1747 = vmul.f32 %v1699, 0.2
  %v1748 = vmul.f32 %v1704, 0.2
  %v1749 = vmul.f32 %v1707, 0.2
  %v1750 = vmul.f32 %v1712, 0.2
  %v1751 = vmul.f32 %v1715, 0.2
  %v1752 = vmul.f32 %v1720, 0.2
  %v1753 = vmul.f32 %v1723, 0.2
  %v1754 = vmul.f32 %v1728, 0.2
  %v1755 = vmul.f32 %v1731, 0.2
  %v1756 = vmul.f32 %v1736, 0.2
  %v1757 = vmul.f32 %v1739, 0.2
  %v1758 = vmax.f32 %v1680, %v1742
  %v1759 = vmax.f32 %v1683, %v1743
  %v1760 = vmax.f32 %v1688, %v1744
  %v1761 = vmax.f32 %v1691, %v1745
  %v1762 = vmax.f32 %v1696, %v1746
  %v1763 = vmax.f32 %v1699, %v1747
  %v1764 = vmax.f32 %v1704, %v1748
  %v1765 = vmax.f32 %v1707, %v1749
  %v1766 = vmax.f32 %v1712, %v1750
  %v1767 = vmax.f32 %v1715, %v1751
  %v1768 = vmax.f32 %v1720, %v1752
  %v1769 = vmax.f32 %v1723, %v1753
  %v1770 = vmax.f32 %v1728, %v1754
  %v1771 = vmax.f32 %v1731, %v1755
  %v1772 = vmax.f32 %v1736, %v1756
  %v1773 = vmax.f32 %v1739, %v1757
  %v1774 = vpack.c.bf16 %v1759, %v1758
  %v1775 = vpack.c.bf16 %v1761, %v1760
  %v1776 = vpack.c.bf16 %v1763, %v1762
  %v1777 = vpack.c.bf16 %v1765, %v1764
  %v1778 = vpack.c.bf16 %v1767, %v1766
  %v1779 = vpack.c.bf16 %v1769, %v1768
  %v1780 = vpack.c.bf16 %v1771, %v1770
  %v1781 = vpack.c.bf16 %v1773, %v1772
  %v1782 = vld [vmem:[%s5] sm:$0xf]
  %v1783 = vld [vmem:[%s5 + $0x4] sm:$0xf]
  %v1786 = vunpack.c.l.b16 %v1782
  %v1787 = vunpack.c.l.b16 %v1783
  %v1788 = vpack.c.b16 %v1787, %v1786
  %1790 = vmatprep.subr.bf16.mxu0 0
  %1791 = vmatpush1.bf16.xpose.msra.mxu0 %v1774
  %1792 = vmatprep.subr.bf16.mxu0 0
  %1793 = vmatpush1.bf16.xpose.msra.mxu0 %v1775
  %1794 = vmatprep.subr.bf16.mxu0 0
  %1795 = vmatpush1.bf16.xpose.msra.mxu0 %v1776
  %1796 = vmatprep.subr.bf16.mxu0 0
  %1797 = vmatpush1.bf16.xpose.msra.mxu0 %v1777
  %1798 = vmatprep.subr.bf16.mxu0 0
  %1799 = vmatpush1.bf16.xpose.msra.mxu0 %v1778
  %1800 = vmatprep.subr.bf16.mxu0 0
  %1801 = vmatpush1.bf16.xpose.msra.mxu0 %v1779
  %1802 = vmatprep.subr.bf16.mxu0 0
  %1803 = vmatpush1.bf16.xpose.msra.mxu0 %v1780
  %1804 = vmatprep.subr.bf16.mxu0 0
  %1805 = vmatpush1.bf16.xpose.msra.mxu0 %v1781
  %1806 = vmatprep.subr.bf16.mxu0 0
  %1807 = vmatpush1.bf16.xpose.msra.mxu0 0
  %1808 = vmatprep.subr.bf16.mxu0 0
  %1809 = vmatpush1.bf16.xpose.msra.mxu0 0
  %1810 = vmatprep.subr.bf16.mxu0 0
  %1811 = vmatpush1.bf16.xpose.msra.mxu0 0
  %1812 = vmatprep.subr.bf16.mxu0 0
  %1813 = vmatpush1.bf16.xpose.msra.mxu0 0
  %1814 = vmatprep.subr.bf16.mxu0 0
  %1815 = vmatpush1.bf16.xpose.msra.mxu0 0
  %1816 = vmatprep.subr.bf16.mxu0 0
  %1817 = vmatpush1.bf16.xpose.msra.mxu0 0
  %1818 = vmatprep.subr.bf16.mxu0 0
  %1819 = vmatpush1.bf16.xpose.msra.mxu0 0
  %1820 = vmatprep.subr.bf16.mxu0 0
  %1821 = vmatpush1.bf16.xpose.msra.mxu0 0
  %1822 = vmatprep.mubr.bf16.mxu0 0
  %1823 = vmatmul.mubr.bf16.gmra.mrb[0].mxu0 %v1788
  %v1824 = vpop.f32.mrb[0].mxu0
  %v1825 = vadd.f32 0.0, %v1824
  %v1826 = vpop.f32.mrb[0].mxu0
  %v1827 = vpop.f32.mrb[0].mxu0
  %v1828 = vadd.f32 0.0, %v1827
  %v1829 = vpop.f32.mrb[0].mxu0
  %1830 = vdwg.mxu0
  %1831 = vst [vmem:[%s6] sm:$0xff] %v1825
  %1832 = vst [vmem:[%s6 + $0x8] sm:$0xff] %v1828
  // Predicated region
  $region26: #{_forward_padded.1} parent=0 // pred_check
    _
  $region27: #{_forward_padded.1} parent=0 // pred_check_branch
    %1834 = sbr.rel (0) target = $region29
  $region28: #{_forward_padded.1} parent=0 // pred_region
    _
  $region29: #{_forward_padded.1} parent=0 // pred_fallthru
    _
  // Predicated region
  $region30: #{_forward_padded.1} parent=0 // pred_check
    _
  $region31: #{_forward_padded.1} parent=0 // pred_check_branch
    %1836 = sbr.rel (0) target = $region33
  $region32: #{_forward_padded.1} parent=0 // pred_region
    _
  $region33: #{_forward_padded.1} parent=0 // pred_fallthru
    _

</llo_original>
